<compile_context>
chip_gen: v7x
topology: tpu7x:2x2x1
jax: 0.10.0
libtpu: 0.0.40
codegen_flags: <defaults>
</compile_context>

<pallas_src>
import jax
import jax.numpy as jnp
from jax.experimental import pallas as pl
from jax.experimental.pallas import tpu as pltpu


def _round_up(x, m):
    return (x + m - 1) // m * m


def _vmem_capacity_bytes():
    try:
        return int(pltpu.get_tpu_info().vmem_capacity_bytes)
    except Exception:
        return 64 << 20  # v7x-safe fallback


def mlp2_kernel(x_ref, w1_ref, b1_ref, w2_ref, b2_ref, o_ref, acc_ref):
    """relu(relu(x @ W1[:,hslice] + b1[hslice]) @ W2[hslice,:]) summed over hslices."""
    k = pl.program_id(1)

    @pl.when(k == 0)
    def _():
        acc_ref[...] = jnp.zeros_like(acc_ref)

    # Layer 1 on the current hidden slice: MXU matmul, f32 accumulation;
    # bias + ReLU on the VPU in f32 (free slots under an MXU-bound kernel).
    h = jnp.dot(x_ref[...], w1_ref[...], preferred_element_type=jnp.float32)
    h = jnp.maximum(h + b1_ref[...], 0.0)

    # Layer 2 contribution of this slice, accumulated in f32 VMEM scratch.
    acc_ref[...] += jnp.dot(h.astype(w2_ref.dtype), w2_ref[...],
                            preferred_element_type=jnp.float32)

    @pl.when(k == pl.num_programs(1) - 1)
    def _():
        o_ref[...] = jnp.maximum(acc_ref[...] + b2_ref[...], 0.0).astype(o_ref.dtype)


def shared_net_multilayered(x, w1, b1, w2, b2, *, tile_b=256, tile_h=None,
                            compute_dtype=None):
    """Fused 2-layer MLP: relu(relu(x @ w1 + b1) @ w2 + b2).

    x: [B, IN]; w1: [IN, H]; b1: [H]; w2: [H, OUT]; b2: [OUT] -> [B, OUT].
    Weights are stored already transposed relative to PyTorch's (out, in) layout.
    """
    B, IN = x.shape
    IN_w, H = w1.shape
    H_w, OUT = w2.shape
    assert IN_w == IN and H_w == H and b1.shape == (H,) and b2.shape == (OUT,)

    out_dtype = x.dtype
    if compute_dtype is None:
        compute_dtype = x.dtype
    w_itemsize = jnp.dtype(compute_dtype).itemsize
    out_itemsize = jnp.dtype(out_dtype).itemsize
    vmem_cap = _vmem_capacity_bytes()

    # --- Batch tiling: sublane aligned; aim for >= 2 grid steps when the batch
    # allows it (v7x has 2 TensorCores sharded via "parallel"). ---
    sublane = 8 if w_itemsize >= 4 else 16
    if B >= 2 * sublane:
        tile_b = min(tile_b, _round_up(pl.cdiv(B, 2), sublane))
    tile_b = max(sublane, min(_round_up(tile_b, sublane), _round_up(B, sublane)))
    B_pad = _round_up(B, tile_b)

    # --- Hidden tiling: keep weights fully VMEM-resident when they fit;
    # otherwise slice H (multiple of 128) so the per-step footprint is bounded. ---
    if tile_h is None:
        per_h_bytes = (IN + OUT) * w_itemsize + 4          # W1 col + W2 row + b1
        weight_budget = max(8 << 20, int(0.35 * vmem_cap))
        if per_h_bytes * H <= weight_budget:
            tile_h = H
        else:
            tile_h = max(128, (weight_budget // (2 * per_h_bytes)) // 128 * 128)
    if tile_h >= H:
        tile_h = H
        H_pad = H
    else:
        tile_h = max(128, (tile_h // 128) * 128)
        H_pad = _round_up(H, tile_h)
    nb = B_pad // tile_b
    nh = H_pad // tile_h

    # --- Padding / dtype plumbing in the wrapper (keeps all kernel tiles dense). ---
    x_p = x.astype(compute_dtype)
    if B_pad != B:
        x_p = jnp.pad(x_p, ((0, B_pad - B), (0, 0)))
    w1_p = w1.astype(compute_dtype)
    w2_p = w2.astype(compute_dtype)
    b1_p = b1.astype(jnp.float32).reshape(1, H)
    if H_pad != H:
        w1_p = jnp.pad(w1_p, ((0, 0), (0, H_pad - H)))
        b1_p = jnp.pad(b1_p, ((0, 0), (0, H_pad - H)))
        w2_p = jnp.pad(w2_p, ((0, H_pad - H), (0, 0)))
    b2_p = b2.astype(jnp.float32).reshape(1, OUT)

    # --- VMEM budget: actual per-step footprint + headroom, clamped to the chip. ---
    nbuf_w = 1 if nh == 1 else 2
    vmem_needed = (
        2 * tile_b * IN * w_itemsize                           # x (double-buffered)
        + 2 * tile_b * OUT * out_itemsize                      # out (double-buffered)
        + nbuf_w * (IN * tile_h + tile_h * OUT) * w_itemsize   # W1 / W2 slices
        + nbuf_w * tile_h * 4 + OUT * 4                        # biases (f32)
        + tile_b * OUT * 4                                     # f32 accumulator scratch
        + tile_b * tile_h * (4 + w_itemsize)                   # hidden f32 + cast copy
    )
    vmem_limit = int(min(max(int(1.5 * vmem_needed) + (2 << 20), 32 << 20),
                         int(0.85 * vmem_cap)))

    resident_bufs = 1 if nh == 1 else None  # single-buffer constant-index operands

    def build_specs(use_pipeline_mode):
        def spec(shape, imap, bufs=None):
            if use_pipeline_mode and bufs is not None:
                return pl.BlockSpec(shape, imap, pipeline_mode=pl.Buffered(bufs))
            return pl.BlockSpec(shape, imap)

        in_specs = [
            spec((tile_b, IN), lambda i, k: (i, 0)),                  # x batch tile
            spec((IN, tile_h), lambda i, k: (0, k), resident_bufs),   # W1 slice
            spec((1, tile_h), lambda i, k: (0, k), resident_bufs),    # b1 slice
            spec((tile_h, OUT), lambda i, k: (k, 0), resident_bufs),  # W2 slice
            spec((1, OUT), lambda i, k: (0, 0), 1),                   # b2 (resident)
        ]
        out_specs = pl.BlockSpec((tile_b, OUT), lambda i, k: (i, 0))
        return in_specs, out_specs

    def run(use_pipeline_mode):
        in_specs, out_specs = build_specs(use_pipeline_mode)
        return pl.pallas_call(
            mlp2_kernel,
            out_shape=jax.ShapeDtypeStruct((B_pad, OUT), out_dtype),
            grid_spec=pltpu.PrefetchScalarGridSpec(
                num_scalar_prefetch=0,
                grid=(nb, nh),
                in_specs=in_specs,
                out_specs=out_specs,
                scratch_shapes=[pltpu.VMEM((tile_b, OUT), jnp.float32)],
            ),
            compiler_params=pltpu.CompilerParams(
                dimension_semantics=("parallel", "arbitrary"),
                vmem_limit_bytes=vmem_limit,
            ),
        )(x_p, w1_p, b1_p, w2_p, b2_p)

    try:
        out = run(use_pipeline_mode=True)
    except Exception:
        # Fallback for JAX versions without BlockSpec.pipeline_mode support.
        out = run(use_pipeline_mode=False)

    return out[:B] if B_pad != B else out


if __name__ == "__main__":
    # Small, tile-friendly shapes implied by the module.
    batch, infeatures, outfeatures = 16, 128, 128
    hidden = 2 * infeatures

    key = jax.random.PRNGKey(0)
    kx, k1, k2 = jax.random.split(key, 3)

    x = jax.random.normal(kx, (batch, infeatures), dtype=jnp.float32)
    # weights_init_normal: W ~ N(0, 1/sqrt(fan_in)), bias = 0.
    w1 = jax.random.normal(k1, (infeatures, hidden), jnp.float32) / (infeatures ** 0.5)
    b1 = jnp.zeros((hidden,), jnp.float32)
    w2 = jax.random.normal(k2, (hidden, outfeatures), jnp.float32) / (hidden ** 0.5)
    b2 = jnp.zeros((outfeatures,), jnp.float32)

    # Pure-JAX reference.
    h_ref = jnp.maximum(x @ w1 + b1, 0.0)
    ref = jnp.maximum(h_ref @ w2 + b2, 0.0)

    # f32 path (tight tolerance; grid gets 2 batch steps).
    out_f32 = jax.block_until_ready(
        shared_net_multilayered(x, w1, b1, w2, b2, compute_dtype=jnp.float32))
    assert out_f32.shape == (batch, outfeatures)
    assert jnp.allclose(out_f32, ref, atol=1e-4, rtol=1e-4), "f32 mismatch vs reference"

    # bf16 MXU path (bf16 inputs/weights, f32 accumulation): loosened tolerance.
    out_bf16 = jax.block_until_ready(
        shared_net_multilayered(x, w1, b1, w2, b2, compute_dtype=jnp.bfloat16))
    assert jnp.allclose(out_bf16, ref, atol=5e-2, rtol=5e-2), "bf16 mismatch vs reference"

    # Ragged batch: exercises in-wrapper padding to a sublane-aligned full tile.
    out_ragged = jax.block_until_ready(
        shared_net_multilayered(x[:12], w1, b1, w2, b2, compute_dtype=jnp.float32))
    assert out_ragged.shape == (12, outfeatures)
    assert jnp.allclose(out_ragged, ref[:12], atol=1e-4, rtol=1e-4), "padded-batch mismatch"

    print("KERNEL_OK")
</pallas_src>

<mosaic_0001>
module attributes {stable_mosaic.version = 11 : i64} {
  func.func @mlp2_kernel(%arg0: i32, %arg1: i32, %arg2: memref<8x128xf32, #tpu.memory_space<vmem>>, %arg3: memref<128x256xf32, #tpu.memory_space<vmem>>, %arg4: memref<1x256xf32, #tpu.memory_space<vmem>>, %arg5: memref<256x128xf32, #tpu.memory_space<vmem>>, %arg6: memref<1x128xf32, #tpu.memory_space<vmem>>, %arg7: memref<8x128xf32, #tpu.memory_space<vmem>>, %arg8: memref<8x128xf32, #tpu.memory_space<vmem>>) attributes {dimension_semantics = [#tpu.dimension_semantics<parallel>, #tpu.dimension_semantics<arbitrary>], iteration_bounds = array<i64: 2, 1>, scalar_prefetch = 0 : i64, scratch_operands = 1 : i64, tpu.core_type = #tpu.core_type<tc>, window_params = [{transform_indices = @transform_0, window_bounds = array<i64: 8, 128>}, {pipeline_mode = #tpu.pipeline_mode<synchronous>, transform_indices = @transform_1, window_bounds = array<i64: 128, 256>}, {pipeline_mode = #tpu.pipeline_mode<synchronous>, transform_indices = @transform_2, window_bounds = array<i64: 1, 256>}, {pipeline_mode = #tpu.pipeline_mode<synchronous>, transform_indices = @transform_3, window_bounds = array<i64: 256, 128>}, {pipeline_mode = #tpu.pipeline_mode<synchronous>, transform_indices = @transform_4, window_bounds = array<i64: 1, 128>}, {transform_indices = @transform_5, window_bounds = array<i64: 8, 128>}]} {
    %c0_i32 = arith.constant 0 : i32
    %0 = arith.cmpi eq, %arg1, %c0_i32 : i32
    %1 = arith.extui %0 : i1 to i32
    %c0_i32_0 = arith.constant 0 : i32
    %2 = arith.cmpi ne, %1, %c0_i32_0 : i32
    scf.if %2 {
      %cst_16 = arith.constant 0.000000e+00 : f32
      %19 = vector.broadcast %cst_16 : f32 to vector<8x128xf32>
      %c0_17 = arith.constant 0 : index
      %c0_18 = arith.constant 0 : index
      %20 = vector.load %arg8[%c0_17, %c0_18] : memref<8x128xf32, #tpu.memory_space<vmem>>, vector<8x128xf32>
      tpu.vector_store %arg8[%c0_17, %c0_18], %19 {strides = array<i32>} : memref<8x128xf32, #tpu.memory_space<vmem>>, vector<8x128xf32>,
    } else {
    }
    %c0 = arith.constant 0 : index
    %c0_1 = arith.constant 0 : index
    %3 = vector.load %arg2[%c0, %c0_1] : memref<8x128xf32, #tpu.memory_space<vmem>>, vector<8x128xf32>
    %c0_2 = arith.constant 0 : index
    %c0_3 = arith.constant 0 : index
    %4 = vector.load %arg3[%c0_2, %c0_3] : memref<128x256xf32, #tpu.memory_space<vmem>>, vector<128x256xf32>
    %cst = arith.constant dense<0.000000e+00> : vector<8x256xf32>
    %5 = tpu.matmul %3, %4, %cst {dimension_numbers = #tpu.dot_dimension_numbers<[1], [0], [0], [1], [0, 0, 1, 1], [], []>} : vector<8x128xf32>, vector<128x256xf32>, vector<8x256xf32> -> vector<8x256xf32>
    %c0_4 = arith.constant 0 : index
    %c0_5 = arith.constant 0 : index
    %6 = vector.load %arg4[%c0_4, %c0_5] : memref<1x256xf32, #tpu.memory_space<vmem>>, vector<1x256xf32>
    %7 = vector.broadcast %6 : vector<1x256xf32> to vector<8x256xf32>
    %8 = arith.addf %5, %7 : vector<8x256xf32>
    %cst_6 = arith.constant 0.000000e+00 : f32
    %9 = vector.broadcast %cst_6 : f32 to vector<8x256xf32>
    %10 = arith.maximumf %8, %9 : vector<8x256xf32>
    %c0_7 = arith.constant 0 : index
    %c0_8 = arith.constant 0 : index
    %11 = vector.load %arg8[%c0_7, %c0_8] : memref<8x128xf32, #tpu.memory_space<vmem>>, vector<8x128xf32>
    %c0_9 = arith.constant 0 : index
    %c0_10 = arith.constant 0 : index
    %12 = vector.load %arg5[%c0_9, %c0_10] : memref<256x128xf32, #tpu.memory_space<vmem>>, vector<256x128xf32>
    %cst_11 = arith.constant dense<0.000000e+00> : vector<8x128xf32>
    %13 = tpu.matmul %10, %12, %cst_11 {dimension_numbers = #tpu.dot_dimension_numbers<[1], [0], [0], [1], [0, 0, 1, 1], [], []>} : vector<8x256xf32>, vector<256x128xf32>, vector<8x128xf32> -> vector<8x128xf32>
    %14 = arith.addf %11, %13 : vector<8x128xf32>
    %c0_12 = arith.constant 0 : index
    %c0_13 = arith.constant 0 : index
    %15 = vector.load %arg8[%c0_12, %c0_13] : memref<8x128xf32, #tpu.memory_space<vmem>>, vector<8x128xf32>
    tpu.vector_store %arg8[%c0_12, %c0_13], %14 {strides = array<i32>} : memref<8x128xf32, #tpu.memory_space<vmem>>, vector<8x128xf32>,
    %c0_i32_14 = arith.constant 0 : i32
    %16 = arith.cmpi eq, %arg1, %c0_i32_14 : i32
    %17 = arith.extui %16 : i1 to i32
    %c0_i32_15 = arith.constant 0 : i32
    %18 = arith.cmpi ne, %17, %c0_i32_15 : i32
    scf.if %18 {
      %c0_16 = arith.constant 0 : index
      %c0_17 = arith.constant 0 : index
      %19 = vector.load %arg8[%c0_16, %c0_17] : memref<8x128xf32, #tpu.memory_space<vmem>>, vector<8x128xf32>
      %c0_18 = arith.constant 0 : index
      %c0_19 = arith.constant 0 : index
      %20 = vector.load %arg6[%c0_18, %c0_19] : memref<1x128xf32, #tpu.memory_space<vmem>>, vector<1x128xf32>
      %21 = vector.broadcast %20 : vector<1x128xf32> to vector<8x128xf32>
      %22 = arith.addf %19, %21 : vector<8x128xf32>
      %cst_20 = arith.constant 0.000000e+00 : f32
      %23 = vector.broadcast %cst_20 : f32 to vector<8x128xf32>
      %24 = arith.maximumf %22, %23 : vector<8x128xf32>
      %c0_21 = arith.constant 0 : index
      %c0_22 = arith.constant 0 : index
      %25 = vector.load %arg7[%c0_21, %c0_22] : memref<8x128xf32, #tpu.memory_space<vmem>>, vector<8x128xf32>
      tpu.vector_store %arg7[%c0_21, %c0_22], %24 {strides = array<i32>} : memref<8x128xf32, #tpu.memory_space<vmem>>, vector<8x128xf32>,
    } else {
    }
    return
  }
  func.func @transform_0(%arg0: i32, %arg1: i32) -> (i32, i32) {
    %c0_i32 = arith.constant 0 : i32
    %c0_i32_0 = arith.constant 0 : i32
    return %arg0, %c0_i32 : i32, i32
  }
  func.func @transform_1(%arg0: i32, %arg1: i32) -> (i32, i32) {
    %c0_i32 = arith.constant 0 : i32
    %c0_i32_0 = arith.constant 0 : i32
    return %c0_i32, %arg1 : i32, i32
  }
  func.func @transform_2(%arg0: i32, %arg1: i32) -> (i32, i32) {
    %c0_i32 = arith.constant 0 : i32
    %c0_i32_0 = arith.constant 0 : i32
    return %c0_i32, %arg1 : i32, i32
  }
  func.func @transform_3(%arg0: i32, %arg1: i32) -> (i32, i32) {
    %c0_i32 = arith.constant 0 : i32
    %c0_i32_0 = arith.constant 0 : i32
    return %arg1, %c0_i32 : i32, i32
  }
  func.func @transform_4(%arg0: i32, %arg1: i32) -> (i32, i32) {
    %c0_i32 = arith.constant 0 : i32
    %c0_i32_0 = arith.constant 0 : i32
    %c0_i32_1 = arith.constant 0 : i32
    return %c0_i32, %c0_i32_0 : i32, i32
  }
  func.func @transform_5(%arg0: i32, %arg1: i32) -> (i32, i32) {
    %c0_i32 = arith.constant 0 : i32
    %c0_i32_0 = arith.constant 0 : i32
    return %arg0, %c0_i32 : i32, i32
  }
}

module attributes {stable_mosaic.version = 11 : i64} {
  func.func @mlp2_kernel(%arg0: i32, %arg1: i32, %arg2: memref<8x128xf32, #tpu.memory_space<vmem>>, %arg3: memref<128x256xf32, #tpu.memory_space<vmem>>, %arg4: memref<1x256xf32, #tpu.memory_space<vmem>>, %arg5: memref<256x128xf32, #tpu.memory_space<vmem>>, %arg6: memref<1x128xf32, #tpu.memory_space<vmem>>, %arg7: memref<8x128xf32, #tpu.memory_space<vmem>>, %arg8: memref<8x128xf32, #tpu.memory_space<vmem>>) attributes {dimension_semantics = [#tpu.dimension_semantics<parallel>, #tpu.dimension_semantics<arbitrary>], iteration_bounds = array<i64: 2, 1>, scalar_prefetch = 0 : i64, scratch_operands = 1 : i64, tpu.core_type = #tpu.core_type<tc>, window_params = [{transform_indices = @transform_0, window_bounds = array<i64: 8, 128>}, {transform_indices = @transform_1, window_bounds = array<i64: 128, 256>}, {transform_indices = @transform_2, window_bounds = array<i64: 1, 256>}, {transform_indices = @transform_3, window_bounds = array<i64: 256, 128>}, {pipeline_mode = #tpu.pipeline_mode<synchronous>, transform_indices = @transform_4, window_bounds = array<i64: 1, 128>}, {transform_indices = @transform_5, window_bounds = array<i64: 8, 128>}]} {
    %c0_i32 = arith.constant 0 : i32
    %0 = arith.cmpi eq, %arg1, %c0_i32 : i32
    %1 = arith.extui %0 : i1 to i32
    %c0_i32_0 = arith.constant 0 : i32
    %2 = arith.cmpi ne, %1, %c0_i32_0 : i32
    scf.if %2 {
      %cst_16 = arith.constant 0.000000e+00 : f32
      %19 = vector.broadcast %cst_16 : f32 to vector<8x128xf32>
      %c0_17 = arith.constant 0 : index
      %c0_18 = arith.constant 0 : index
      %20 = vector.load %arg8[%c0_17, %c0_18] : memref<8x128xf32, #tpu.memory_space<vmem>>, vector<8x128xf32>
      tpu.vector_store %arg8[%c0_17, %c0_18], %19 {strides = array<i32>} : memref<8x128xf32, #tpu.memory_space<vmem>>, vector<8x128xf32>,
    } else {
    }
    %c0 = arith.constant 0 : index
    %c0_1 = arith.constant 0 : index
    %3 = vector.load %arg2[%c0, %c0_1] : memref<8x128xf32, #tpu.memory_space<vmem>>, vector<8x128xf32>
    %c0_2 = arith.constant 0 : index
    %c0_3 = arith.constant 0 : index
    %4 = vector.load %arg3[%c0_2, %c0_3] : memref<128x256xf32, #tpu.memory_space<vmem>>, vector<128x256xf32>
    %cst = arith.constant dense<0.000000e+00> : vector<8x256xf32>
    %5 = tpu.matmul %3, %4, %cst {dimension_numbers = #tpu.dot_dimension_numbers<[1], [0], [0], [1], [0, 0, 1, 1], [], []>} : vector<8x128xf32>, vector<128x256xf32>, vector<8x256xf32> -> vector<8x256xf32>
    %c0_4 = arith.constant 0 : index
    %c0_5 = arith.constant 0 : index
    %6 = vector.load %arg4[%c0_4, %c0_5] : memref<1x256xf32, #tpu.memory_space<vmem>>, vector<1x256xf32>
    %7 = vector.broadcast %6 : vector<1x256xf32> to vector<8x256xf32>
    %8 = arith.addf %5, %7 : vector<8x256xf32>
    %cst_6 = arith.constant 0.000000e+00 : f32
    %9 = vector.broadcast %cst_6 : f32 to vector<8x256xf32>
    %10 = arith.maximumf %8, %9 : vector<8x256xf32>
    %c0_7 = arith.constant 0 : index
    %c0_8 = arith.constant 0 : index
    %11 = vector.load %arg8[%c0_7, %c0_8] : memref<8x128xf32, #tpu.memory_space<vmem>>, vector<8x128xf32>
    %c0_9 = arith.constant 0 : index
    %c0_10 = arith.constant 0 : index
    %12 = vector.load %arg5[%c0_9, %c0_10] : memref<256x128xf32, #tpu.memory_space<vmem>>, vector<256x128xf32>
    %cst_11 = arith.constant dense<0.000000e+00> : vector<8x128xf32>
    %13 = tpu.matmul %10, %12, %cst_11 {dimension_numbers = #tpu.dot_dimension_numbers<[1], [0], [0], [1], [0, 0, 1, 1], [], []>} : vector<8x256xf32>, vector<256x128xf32>, vector<8x128xf32> -> vector<8x128xf32>
    %14 = arith.addf %11, %13 : vector<8x128xf32>
    %c0_12 = arith.constant 0 : index
    %c0_13 = arith.constant 0 : index
    %15 = vector.load %arg8[%c0_12, %c0_13] : memref<8x128xf32, #tpu.memory_space<vmem>>, vector<8x128xf32>
    tpu.vector_store %arg8[%c0_12, %c0_13], %14 {strides = array<i32>} : memref<8x128xf32, #tpu.memory_space<vmem>>, vector<8x128xf32>,
    %c0_i32_14 = arith.constant 0 : i32
    %16 = arith.cmpi eq, %arg1, %c0_i32_14 : i32
    %17 = arith.extui %16 : i1 to i32
    %c0_i32_15 = arith.constant 0 : i32
    %18 = arith.cmpi ne, %17, %c0_i32_15 : i32
    scf.if %18 {
      %c0_16 = arith.constant 0 : index
      %c0_17 = arith.constant 0 : index
      %19 = vector.load %arg8[%c0_16, %c0_17] : memref<8x128xf32, #tpu.memory_space<vmem>>, vector<8x128xf32>
      %c0_18 = arith.constant 0 : index
      %c0_19 = arith.constant 0 : index
      %20 = vector.load %arg6[%c0_18, %c0_19] : memref<1x128xf32, #tpu.memory_space<vmem>>, vector<1x128xf32>
      %21 = vector.broadcast %20 : vector<1x128xf32> to vector<8x128xf32>
      %22 = arith.addf %19, %21 : vector<8x128xf32>
      %cst_20 = arith.constant 0.000000e+00 : f32
      %23 = vector.broadcast %cst_20 : f32 to vector<8x128xf32>
      %24 = arith.maximumf %22, %23 : vector<8x128xf32>
      %c0_21 = arith.constant 0 : index
      %c0_22 = arith.constant 0 : index
      %25 = vector.load %arg7[%c0_21, %c0_22] : memref<8x128xf32, #tpu.memory_space<vmem>>, vector<8x128xf32>
      tpu.vector_store %arg7[%c0_21, %c0_22], %24 {strides = array<i32>} : memref<8x128xf32, #tpu.memory_space<vmem>>, vector<8x128xf32>,
    } else {
    }
    return
  }
  func.func @transform_0(%arg0: i32, %arg1: i32) -> (i32, i32) {
    %c0_i32 = arith.constant 0 : i32
    %c0_i32_0 = arith.constant 0 : i32
    return %arg0, %c0_i32 : i32, i32
  }
  func.func @transform_1(%arg0: i32, %arg1: i32) -> (i32, i32) {
    %c0_i32 = arith.constant 0 : i32
    %c0_i32_0 = arith.constant 0 : i32
    return %c0_i32, %arg1 : i32, i32
  }
  func.func @transform_2(%arg0: i32, %arg1: i32) -> (i32, i32) {
    %c0_i32 = arith.constant 0 : i32
    %c0_i32_0 = arith.constant 0 : i32
    return %c0_i32, %arg1 : i32, i32
  }
  func.func @transform_3(%arg0: i32, %arg1: i32) -> (i32, i32) {
    %c0_i32 = arith.constant 0 : i32
    %c0_i32_0 = arith.constant 0 : i32
    return %arg1, %c0_i32 : i32, i32
  }
  func.func @transform_4(%arg0: i32, %arg1: i32) -> (i32, i32) {
    %c0_i32 = arith.constant 0 : i32
    %c0_i32_0 = arith.constant 0 : i32
    %c0_i32_1 = arith.constant 0 : i32
    return %c0_i32, %c0_i32_0 : i32, i32
  }
  func.func @transform_5(%arg0: i32, %arg1: i32) -> (i32, i32) {
    %c0_i32 = arith.constant 0 : i32
    %c0_i32_0 = arith.constant 0 : i32
    return %arg0, %c0_i32 : i32, i32
  }
}

</mosaic_0001>

<llo_original>
// kernel: tpu_custom_call.1
$region0: #{tpu_custom_call.1}
  #allocation0 [shape = 'u32[]', space=smem, size = 0x4, offset = 0x4, fixed_abs, tag = 'smem constant byte address 0x4 - core index']
  #allocation1 [shape = 'u32[144,128]{1,0:T(1,128)}', space=vmem, size = 0x12000, scoped, tag = 'internal scratch']
  #allocation2 [shape = 'f32[8,128]{1,0:T(8,128)}', space=vmem, size = 0x1000, scoped, tag = 'scratch operand']
  %s0 = inlined_call_operand.hbm [shape: f32[16,128], index: 0, kind: input, shape index: {}]
  %s1 = inlined_call_operand.hbm [shape: f32[128,256], index: 1, kind: input, shape index: {}]
  %s2 = inlined_call_operand.vmem [shape: f32[1,256], index: 2, kind: input, shape index: {}]
  %s3 = inlined_call_operand.hbm [shape: f32[256,128], index: 3, kind: input, shape index: {}]
  %s4 = inlined_call_operand.vmem [shape: f32[1,128], index: 4, kind: input, shape index: {}]
  %s5 = inlined_call_operand.hbm [shape: f32[16,128], index: 5, kind: output, shape index: {}]
  %s6 = sld [smem:[#allocation0]]
  $region73: #{tpu_custom_call.1} parent=0
    _
  %s8 = ssub.s32 1, %s6
  %s9 = scalar_select 0, %s8, %s6
  $region1: #{tpu_custom_call.1} parent=0
    #allocation3 [shape = 'u8[8192]{0}', space=vmem, size = 0x2000, scoped, tag = 'input window, operand 0']
    #allocation4 [shape = 's32[2]{0}', space=sflag, size = 0x8, scoped, tag = 'scoped memory for tpu_custom_call.1']
    #allocation5 [shape = 's32[2]{0}', space=sflag, size = 0x8, scoped, tag = 'scoped memory for tpu_custom_call.1']
    #allocation6 [shape = 'u8[131072]{0}', space=vmem, size = 0x20000, scoped, tag = 'input window, operand 1, single buffered']
    #allocation7 [shape = 's32[1]{0}', space=sflag, size = 0x4, scoped, tag = 'scoped memory for tpu_custom_call.1']
    #allocation8 [shape = 'u8[131072]{0}', space=vmem, size = 0x20000, scoped, tag = 'input window, operand 3, single buffered']
    #allocation9 [shape = 'u8[8192]{0}', space=vmem, size = 0x2000, scoped, tag = 'output window, operand 0']
    %10 = vsyncpa [#allocation4], 0
    %s11 = scalar_lea.sflag [#allocation4], 1
    %12 = vsyncpa %s11, 0
    %13 = vsyncpa [#allocation7], 0
    %14 = vsyncpa [#allocation5], 0
    %s15 = scalar_lea.sflag [#allocation5], 1
    %16 = vsyncpa %s15, 0
    loop: start=0, step=1, limit=4
    $region2: #{tpu_custom_call.1} parent=1 // loop_pre_header
      _
    $region3: #{tpu_custom_call.1} parent=1 // loop_header
      %s18 = sphi 0, %s22
      %p19 = scmp.ge.s32.totalorder %s18, 4
      %s25 = sphi 0, %s37
      %s26 = sphi 0, %s33
      %s27 = sphi 0, %s25
      %s28 = sphi 0, %s26
      %s29 = sphi 0, %s27
      %s30 = sphi 0, %s28
      %s40 = sphi 0, %s42
      %s43 = sphi 0, %s40
      %s44 = sphi 0, %s43
      %s60 = sphi 0, %s44
      %s66 = sphi 0, %s68
      %s69 = sphi 0, %s66
      %s70 = sphi 0, %s69
      %s86 = sphi 0, %s70
      %s92 = sphi 0, %s94
      %s95 = sphi 0, %s92
      %s96 = sphi 0, %s95
      %s112 = sphi 0, %s96
      %s118 = sphi 0, %s120
      %s121 = sphi 0, %s118
      %s122 = sphi 0, %s121
      %s138 = sphi 0, %s122
      %s142 = sphi 0, %s142
      %s144 = sphi 0, %s142
      %s145 = sphi 0, %s144
      %s159 = sphi 0, %s145
      %s165 = sphi 0, %s167
      %s168 = sphi 0, %s165
      %s169 = sphi 0, %s168
      %s185 = sphi 0, %s169
    $region4: #{tpu_custom_call.1} parent=1 // loop_header_branch
      %21 = sbr.rel (%p19) target = $region8
    $region5: #{tpu_custom_call.1} parent=1 // loop_body
      %s23 = ssub.s32 %s18, 1
      %s24 = ssub.s32 %s18, 2
      %s31 = sadd.s32 1, %s26
      %p32 = scmp.ge.s32.totalorder %s31, 1
      %s33 = scalar_select %p32, 0, %s31
      %s34 = sadd.s32 1, %s25
      %s35 = scalar_select %p32, %s34, %s25
      %p36 = scmp.ge.s32.totalorder %s35, 2
      %s37 = scalar_select %p36, 0, %s35
      %s38 = ssub.s32 %s25, %s37
      %p39 = scmp.eq.s32.totalorder %s38, 0
      %s41 = sadd.s32 %s40, 1
      %s42 = scalar_select %p39, %s40, %s41
      %p45 = pneg %p39
      %p46 = scmp.eq.s32.totalorder %s18, 1
      %p47 = por %p45, %p46
      %p48 = scmp.ne.s32.totalorder %s40, %s43
      %p49 = scmp.eq.s32.totalorder %s18, 0
      %p50 = por %p48, %p49
      %p51 = scmp.ne.s32.totalorder %s40, %s43
      %p52 = scmp.eq.s32.totalorder %s23, 1
      %p53 = por %p51, %p52
      %p54 = scmp.ne.s32.totalorder %s43, %s44
      %p55 = scmp.eq.s32.totalorder %s23, 0
      %p56 = por %p54, %p55
      %p57 = scmp.ne.s32.totalorder %s43, %s44
      %p58 = scmp.eq.s32.totalorder %s24, 1
      %p59 = por %p57, %p58
      %p61 = scmp.ne.s32.totalorder %s44, %s60
      %p62 = scmp.eq.s32.totalorder %s24, 0
      %p63 = por %p61, %p62
      %s64 = ssub.s32 %s26, %s33
      %p65 = scmp.eq.s32.totalorder %s64, 0
      %s67 = sadd.s32 %s66, 1
      %s68 = scalar_select %p65, %s66, %s67
      %p71 = pneg %p65
      %p72 = scmp.eq.s32.totalorder %s18, 1
      %p73 = por %p71, %p72
      %p74 = scmp.ne.s32.totalorder %s66, %s69
      %p75 = scmp.eq.s32.totalorder %s18, 0
      %p76 = por %p74, %p75
      %p77 = scmp.ne.s32.totalorder %s66, %s69
      %p78 = scmp.eq.s32.totalorder %s23, 1
      %p79 = por %p77, %p78
      %p80 = scmp.ne.s32.totalorder %s69, %s70
      %p81 = scmp.eq.s32.totalorder %s23, 0
      %p82 = por %p80, %p81
      %p83 = scmp.ne.s32.totalorder %s69, %s70
      %p84 = scmp.eq.s32.totalorder %s24, 1
      %p85 = por %p83, %p84
      %p87 = scmp.ne.s32.totalorder %s70, %s86
      %p88 = scmp.eq.s32.totalorder %s24, 0
      %p89 = por %p87, %p88
      %s90 = ssub.s32 %s26, %s33
      %p91 = scmp.eq.s32.totalorder %s90, 0
      %s93 = sadd.s32 %s92, 1
      %s94 = scalar_select %p91, %s92, %s93
      %p97 = pneg %p91
      %p98 = scmp.eq.s32.totalorder %s18, 1
      %p99 = por %p97, %p98
      %p100 = scmp.ne.s32.totalorder %s92, %s95
      %p101 = scmp.eq.s32.totalorder %s18, 0
      %p102 = por %p100, %p101
      %p103 = scmp.ne.s32.totalorder %s92, %s95
      %p104 = scmp.eq.s32.totalorder %s23, 1
      %p105 = por %p103, %p104
      %p106 = scmp.ne.s32.totalorder %s95, %s96
      %p107 = scmp.eq.s32.totalorder %s23, 0
      %p108 = por %p106, %p107
      %p109 = scmp.ne.s32.totalorder %s95, %s96
      %p110 = scmp.eq.s32.totalorder %s24, 1
      %p111 = por %p109, %p110
      %p113 = scmp.ne.s32.totalorder %s96, %s112
      %p114 = scmp.eq.s32.totalorder %s24, 0
      %p115 = por %p113, %p114
      %s116 = ssub.s32 %s26, %s33
      %p117 = scmp.eq.s32.totalorder %s116, 0
      %s119 = sadd.s32 %s118, 1
      %s120 = scalar_select %p117, %s118, %s119
      %p123 = pneg %p117
      %p124 = scmp.eq.s32.totalorder %s18, 1
      %p125 = por %p123, %p124
      %p126 = scmp.ne.s32.totalorder %s118, %s121
      %p127 = scmp.eq.s32.totalorder %s18, 0
      %p128 = por %p126, %p127
      %p129 = scmp.ne.s32.totalorder %s118, %s121
      %p130 = scmp.eq.s32.totalorder %s23, 1
      %p131 = por %p129, %p130
      %p132 = scmp.ne.s32.totalorder %s121, %s122
      %p133 = scmp.eq.s32.totalorder %s23, 0
      %p134 = por %p132, %p133
      %p135 = scmp.ne.s32.totalorder %s121, %s122
      %p136 = scmp.eq.s32.totalorder %s24, 1
      %p137 = por %p135, %p136
      %p139 = scmp.ne.s32.totalorder %s122, %s138
      %p140 = scmp.eq.s32.totalorder %s24, 0
      %p141 = por %p139, %p140
      %s143 = sadd.s32 %s142, 1
      %p146 = scmp.eq.s32.totalorder %s18, 1
      %p147 = scmp.ne.s32.totalorder %s142, %s144
      %p148 = scmp.eq.s32.totalorder %s18, 0
      %p149 = por %p147, %p148
      %p150 = scmp.ne.s32.totalorder %s142, %s144
      %p151 = scmp.eq.s32.totalorder %s23, 1
      %p152 = por %p150, %p151
      %p153 = scmp.ne.s32.totalorder %s144, %s145
      %p154 = scmp.eq.s32.totalorder %s23, 0
      %p155 = por %p153, %p154
      %p156 = scmp.ne.s32.totalorder %s144, %s145
      %p157 = scmp.eq.s32.totalorder %s24, 1
      %p158 = por %p156, %p157
      %p160 = scmp.ne.s32.totalorder %s145, %s159
      %p161 = scmp.eq.s32.totalorder %s24, 0
      %p162 = por %p160, %p161
      %s163 = ssub.s32 %s25, %s37
      %p164 = scmp.eq.s32.totalorder %s163, 0
      %s166 = sadd.s32 %s165, 1
      %s167 = scalar_select %p164, %s165, %s166
      %p170 = pneg %p164
      %p171 = scmp.eq.s32.totalorder %s18, 1
      %p172 = por %p170, %p171
      %p173 = scmp.ne.s32.totalorder %s165, %s168
      %p174 = scmp.eq.s32.totalorder %s18, 0
      %p175 = por %p173, %p174
      %p176 = scmp.ne.s32.totalorder %s165, %s168
      %p177 = scmp.eq.s32.totalorder %s23, 1
      %p178 = por %p176, %p177
      %p179 = scmp.ne.s32.totalorder %s168, %s169
      %p180 = scmp.eq.s32.totalorder %s23, 0
      %p181 = por %p179, %p180
      %p182 = scmp.ne.s32.totalorder %s168, %s169
      %p183 = scmp.eq.s32.totalorder %s24, 1
      %p184 = por %p182, %p183
      %p186 = scmp.ne.s32.totalorder %s169, %s185
      %p187 = scmp.eq.s32.totalorder %s24, 0
      %p188 = por %p186, %p187
      %p189 = scmp.le.s32.totalorder 1, %s18
      %p190 = scmp.lt.s32.totalorder %s18, 3
      %p191 = pnand %p189, %p190
      %p192 = pneg %p191
      // Predicated region
      $region9: #{tpu_custom_call.1} parent=5 // pred_check
        _
      $region10: #{tpu_custom_call.1} parent=5 // pred_check_branch
        %194 = sbr.rel (%p191) target = $region12
      $region11: #{tpu_custom_call.1} parent=5 // pred_region
        %s195 = ssub.s32 %s18, 1
        // Predicated region
        $region13: #{tpu_custom_call.1} parent=11 // pred_check
          %p196 = pneg %p82
        $region14: #{tpu_custom_call.1} parent=11 // pred_check_branch
          %198 = sbr.rel (%p196) target = $region16
        $region15: #{tpu_custom_call.1} parent=11 // pred_region
          %s199 = smul.u32 2, %s28
          %s201 = ssub.s32 4096, 4096
          %202 = vsyncadd [#allocation7], %s201
          %s203 = smul.addr %s199, 128
          %s204 = scalar_lea.hbm %s1, %s203
          %s205 = sshll.u32 [#allocation6], 4
          %s206 = int_to_ptr.vmem [resolvable:$true] %s205
          %211 = dma.hbm_to_vmem [thread:$0]  %s204, 4096, %s206, [#allocation7], 256, 256, 16
        $region16: #{tpu_custom_call.1} parent=11 // pred_fallthru
          _
        // Predicated region
        $region17: #{tpu_custom_call.1} parent=11 // pred_check
          %p212 = pneg %p108
        $region18: #{tpu_custom_call.1} parent=11 // pred_check_branch
          %214 = sbr.rel (%p212) target = $region20
        $region19: #{tpu_custom_call.1} parent=11 // pred_region
          %s215 = smul.u32 2, %s28
          %p216 = scmp.lt.s32.totalorder %s215, 1
          %s217 = scalar_select %p216, %s215, 1
          %s218 = scalar_lea.vmem %s2, %s217
          %s219 = smul.u32 2, %s28
        $region20: #{tpu_custom_call.1} parent=11 // pred_fallthru
          _
        // Predicated region
        $region21: #{tpu_custom_call.1} parent=11 // pred_check
          %p220 = pneg %p134
        $region22: #{tpu_custom_call.1} parent=11 // pred_check_branch
          %222 = sbr.rel (%p220) target = $region24
        $region23: #{tpu_custom_call.1} parent=11 // pred_region
          %s223 = smul.u32 32, %s28
          %s225 = ssub.s32 4096, 4096
          %226 = vsyncadd [#allocation7], %s225
          %s227 = smul.addr %s223, 128
          %s228 = scalar_lea.hbm %s3, %s227
          %s229 = sshll.u32 [#allocation8], 4
          %s230 = int_to_ptr.vmem [resolvable:$true] %s229
          %235 = dma.hbm_to_vmem [thread:$0]  %s228, 4096, %s230, [#allocation7], 128, 128, 8
        $region24: #{tpu_custom_call.1} parent=11 // pred_fallthru
          _
        // Predicated region
        $region25: #{tpu_custom_call.1} parent=11 // pred_check
          %p236 = pneg %p155
        $region26: #{tpu_custom_call.1} parent=11 // pred_check_branch
          %238 = sbr.rel (%p236) target = $region28
        $region27: #{tpu_custom_call.1} parent=11 // pred_region
          _
        $region28: #{tpu_custom_call.1} parent=11 // pred_fallthru
          _
      $region12: #{tpu_custom_call.1} parent=5 // pred_fallthru
        _
      %p239 = scmp.lt.s32.totalorder %s18, 2
      // Predicated region
      $region29: #{tpu_custom_call.1} parent=5 // pred_check
        %p240 = pneg %p239
      $region30: #{tpu_custom_call.1} parent=5 // pred_check_branch
        %242 = sbr.rel (%p240) target = $region32
      $region31: #{tpu_custom_call.1} parent=5 // pred_region
        // Predicated region
        $region33: #{tpu_custom_call.1} parent=31 // pred_check
          %p243 = pneg %p50
        $region34: #{tpu_custom_call.1} parent=31 // pred_check_branch
          %245 = sbr.rel (%p243) target = $region36
        $region35: #{tpu_custom_call.1} parent=31 // pred_region
          %s246 = sand.u32 %s40, 1
          %s247 = scalar_lea.sflag [#allocation4], %s246
          %s248 = sand.u32 %s40, 1
          %s249 = smul.addr %s248, 8
          %s250 = scalar_lea.vmem [#allocation3], %s249
          %s252 = ssub.s32 128, 128
          %253 = vsyncadd %s247, %s252
          %s254 = smul.addr %s25, 128
          %s255 = scalar_lea.hbm %s0, %s254
          %s257 = sshll.u32 %s250, 4
          %s258 = int_to_ptr.vmem [resolvable:$true] %s257
          %260 = dma.hbm_to_vmem [thread:$0]  %s255, 128, %s258, %s247
        $region36: #{tpu_custom_call.1} parent=31 // pred_fallthru
          _
      $region32: #{tpu_custom_call.1} parent=5 // pred_fallthru
        _
      %p261 = scmp.le.s32.totalorder 1, %s18
      %p262 = scmp.lt.s32.totalorder %s18, 3
      %p263 = pnand %p261, %p262
      %p264 = pneg %p263
      // Predicated region
      $region37: #{tpu_custom_call.1} parent=5 // pred_check
        _
      $region38: #{tpu_custom_call.1} parent=5 // pred_check_branch
        %266 = sbr.rel (%p263) target = $region40
      $region39: #{tpu_custom_call.1} parent=5 // pred_region
        %s267 = ssub.s32 %s18, 1
        %s268 = sand.u32 %s43, 1
        %s269 = scalar_lea.sflag [#allocation4], %s268
        %s270 = sand.u32 %s43, 1
        %s271 = smul.addr %s270, 8
        %s272 = scalar_lea.vmem [#allocation3], %s271
        // Predicated region
        $region41: #{tpu_custom_call.1} parent=39 // pred_check
          %p273 = pneg %p56
        $region42: #{tpu_custom_call.1} parent=39 // pred_check_branch
          %275 = sbr.rel (%p273) target = $region44
        $region43: #{tpu_custom_call.1} parent=39 // pred_region
          %276 = dma.done %s269, 128
        $region44: #{tpu_custom_call.1} parent=39 // pred_fallthru
          _
        // Predicated region
        $region45: #{tpu_custom_call.1} parent=39 // pred_check
          %p277 = pneg %p82
        $region46: #{tpu_custom_call.1} parent=39 // pred_check_branch
          %279 = sbr.rel (%p277) target = $region48
        $region47: #{tpu_custom_call.1} parent=39 // pred_region
          %280 = dma.done [#allocation7], 4096
        $region48: #{tpu_custom_call.1} parent=39 // pred_fallthru
          _
        // Predicated region
        $region49: #{tpu_custom_call.1} parent=39 // pred_check
          %p281 = pneg %p134
        $region50: #{tpu_custom_call.1} parent=39 // pred_check_branch
          %283 = sbr.rel (%p281) target = $region52
        $region51: #{tpu_custom_call.1} parent=39 // pred_region
          %284 = dma.done [#allocation7], 4096
        $region52: #{tpu_custom_call.1} parent=39 // pred_fallthru
          _
        %s285 = sand.u32 %s43, 1
        %s286 = scalar_lea.sflag [#allocation4], %s285
        %s287 = sand.u32 %s43, 1
        %s288 = smul.addr %s287, 8
        %s289 = scalar_lea.vmem [#allocation3], %s288
        %p290 = pneg %p56
        %p291 = pneg %p53
        %p292 = pneg %p82
        %p293 = pneg %p79
        %s294 = smul.u32 2, %s28
        %p295 = scmp.lt.s32.totalorder %s294, 1
        %s296 = scalar_select %p295, %s294, 1
        %s297 = scalar_lea.vmem %s2, %s296
        %p298 = pneg %p108
        %p299 = pneg %p105
        %p300 = pneg %p134
        %p301 = pneg %p131
        %p302 = pneg %p155
        %p303 = pneg %p152
        %p304 = pneg %p181
        %p305 = pneg %p178
        %s306 = sand.u32 %s168, 1
        %s307 = scalar_lea.sflag [#allocation5], %s306
        %s308 = sand.u32 %s168, 1
        %s309 = smul.addr %s308, 8
        %s310 = scalar_lea.vmem [#allocation9], %s309
        %s311 = smul.u32 2, %s28
        %s312 = smul.u32 2, %s28
        %p313 = scmp.lt.s32.totalorder %s312, 1
        %s314 = scalar_select %p313, %s312, 1
        %s315 = scalar_lea.vmem %s2, %s314
        %s316 = smul.u32 2, %s28
        %s317 = smul.u32 32, %s28
        %p318 = scmp.eq.s32.totalorder %s28, 0
        // Predicated region
        $region53: #{tpu_custom_call.1} parent=39 // pred_check
          %p319 = pneg %p318
        $region54: #{tpu_custom_call.1} parent=39 // pred_check_branch
          %321 = sbr.rel (%p319) target = $region56
        $region55: #{tpu_custom_call.1} parent=39 // pred_region
          %322 = vst [vmem:[#allocation2] sm:$0xff] 0.0
        $region56: #{tpu_custom_call.1} parent=39 // pred_fallthru
          _
        %v323 = vld [vmem:[%s272] sm:$0xff]
        %v324 = vld [vmem:[#allocation6] sm:$0xff]
        %v325 = vld [vmem:[#allocation6 + $0x8] sm:$0xff]
        %v326 = vld [vmem:[#allocation6 + $0x10] sm:$0xff]
        %v327 = vld [vmem:[#allocation6 + $0x18] sm:$0xff]
        %v328 = vld [vmem:[#allocation6 + $0x20] sm:$0xff]
        %v329 = vld [vmem:[#allocation6 + $0x28] sm:$0xff]
        %v330 = vld [vmem:[#allocation6 + $0x30] sm:$0xff]
        %v331 = vld [vmem:[#allocation6 + $0x38] sm:$0xff]
        %v332 = vld [vmem:[#allocation6 + $0x40] sm:$0xff]
        %v333 = vld [vmem:[#allocation6 + $0x48] sm:$0xff]
        %v334 = vld [vmem:[#allocation6 + $0x50] sm:$0xff]
        %v335 = vld [vmem:[#allocation6 + $0x58] sm:$0xff]
        %v336 = vld [vmem:[#allocation6 + $0x60] sm:$0xff]
        %v337 = vld [vmem:[#allocation6 + $0x68] sm:$0xff]
        %v338 = vld [vmem:[#allocation6 + $0x70] sm:$0xff]
        %v339 = vld [vmem:[#allocation6 + $0x78] sm:$0xff]
        %v340 = vld [vmem:[#allocation6 + $0x80] sm:$0xff]
        %v341 = vld [vmem:[#allocation6 + $0x88] sm:$0xff]
        %v342 = vld [vmem:[#allocation6 + $0x90] sm:$0xff]
        %v343 = vld [vmem:[#allocation6 + $0x98] sm:$0xff]
        %v344 = vld [vmem:[#allocation6 + $0xa0] sm:$0xff]
        %v345 = vld [vmem:[#allocation6 + $0xa8] sm:$0xff]
        %v346 = vld [vmem:[#allocation6 + $0xb0] sm:$0xff]
        %v347 = vld [vmem:[#allocation6 + $0xb8] sm:$0xff]
        %v348 = vld [vmem:[#allocation6 + $0xc0] sm:$0xff]
        %v349 = vld [vmem:[#allocation6 + $0xc8] sm:$0xff]
        %v350 = vld [vmem:[#allocation6 + $0xd0] sm:$0xff]
        %v351 = vld [vmem:[#allocation6 + $0xd8] sm:$0xff]
        %v352 = vld [vmem:[#allocation6 + $0xe0] sm:$0xff]
        %v353 = vld [vmem:[#allocation6 + $0xe8] sm:$0xff]
        %v354 = vld [vmem:[#allocation6 + $0xf0] sm:$0xff]
        %v355 = vld [vmem:[#allocation6 + $0xf8] sm:$0xff]
        %v356 = vld [vmem:[%s315] sm:$0x3]
        %v358 = vlaneseq
        %v359 = vshrl.u32 %v358, 7
        %v360 = vsub.s32 0, %v359
        %v361 = vrot.slane %v356, %v360
        %v362 = vlaneseq
        %v363 = vshrl.u32 %v362, 7
        %v364 = vsub.s32 1, %v363
        %v365 = vrot.slane %v356, %v364
        %368 = vmatprep.subr.mxu0 %v325
        %369 = vmatpush1.msra.mxu0 %v324
        %370 = vmatprep.subr.mxu0 %v327
        %371 = vmatpush1.msra.mxu0 %v326
        %372 = vmatprep.subr.mxu0 %v329
        %373 = vmatpush1.msra.mxu0 %v328
        %374 = vmatprep.subr.mxu0 %v331
        %375 = vmatpush1.msra.mxu0 %v330
        %376 = vmatprep.subr.mxu0 %v333
        %377 = vmatpush1.msra.mxu0 %v332
        %378 = vmatprep.subr.mxu0 %v335
        %379 = vmatpush1.msra.mxu0 %v334
        %380 = vmatprep.subr.mxu0 %v337
        %381 = vmatpush1.msra.mxu0 %v336
        %382 = vmatprep.subr.mxu0 %v339
        %383 = vmatpush1.msra.mxu0 %v338
        %384 = vmatprep.subr.mxu0 %v341
        %385 = vmatpush1.msra.mxu0 %v340
        %386 = vmatprep.subr.mxu0 %v343
        %387 = vmatpush1.msra.mxu0 %v342
        %388 = vmatprep.subr.mxu0 %v345
        %389 = vmatpush1.msra.mxu0 %v344
        %390 = vmatprep.subr.mxu0 %v347
        %391 = vmatpush1.msra.mxu0 %v346
        %392 = vmatprep.subr.mxu0 %v349
        %393 = vmatpush1.msra.mxu0 %v348
        %394 = vmatprep.subr.mxu0 %v351
        %395 = vmatpush1.msra.mxu0 %v350
        %396 = vmatprep.subr.mxu0 %v353
        %397 = vmatpush1.msra.mxu0 %v352
        %398 = vmatprep.subr.mxu0 %v355
        %399 = vmatpush1.msra.mxu0 %v354
        %400 = vmatprep.subr.mxu0 0.0
        %401 = vmatpush1.msra.mxu0 0.0
        %402 = vmatprep.subr.mxu0 0.0
        %403 = vmatpush1.msra.mxu0 0.0
        %404 = vmatprep.subr.mxu0 0.0
        %405 = vmatpush1.msra.mxu0 0.0
        %406 = vmatprep.subr.mxu0 0.0
        %407 = vmatpush1.msra.mxu0 0.0
        %408 = vmatprep.subr.mxu0 0.0
        %409 = vmatpush1.msra.mxu0 0.0
        %410 = vmatprep.subr.mxu0 0.0
        %411 = vmatpush1.msra.mxu0 0.0
        %412 = vmatprep.subr.mxu0 0.0
        %413 = vmatpush1.msra.mxu0 0.0
        %414 = vmatprep.subr.mxu0 0.0
        %415 = vmatpush1.msra.mxu0 0.0
        %416 = vmatprep.subr.mxu0 0.0
        %417 = vmatpush1.msra.mxu0 0.0
        %418 = vmatprep.subr.mxu0 0.0
        %419 = vmatpush1.msra.mxu0 0.0
        %420 = vmatprep.subr.mxu0 0.0
        %421 = vmatpush1.msra.mxu0 0.0
        %422 = vmatprep.subr.mxu0 0.0
        %423 = vmatpush1.msra.mxu0 0.0
        %424 = vmatprep.subr.mxu0 0.0
        %425 = vmatpush1.msra.mxu0 0.0
        %426 = vmatprep.subr.mxu0 0.0
        %427 = vmatpush1.msra.mxu0 0.0
        %428 = vmatprep.subr.mxu0 0.0
        %429 = vmatpush1.msra.mxu0 0.0
        %430 = vmatprep.subr.mxu0 0.0
        %431 = vmatpush1.msra.mxu0 0.0
        %432 = vmatprep.mubr.f32.mxu0 0.0
        %433 = vmatmul.mubr.f32.gmra.mrb[0].mxu0 %v323
        %v434 = vpop.f32.mrb[0].mxu0
        %v435 = vadd.f32 %v361, %v434
        %v436 = vpop.f32.mrb[0].mxu0
        %v437 = vadd.f32 %v365, %v436
        %438 = vdwg.mxu0
        %v439 = vmax.f32 %v435, 0.0
        %v440 = vmax.f32 %v437, 0.0
        %v441 = vld [vmem:[#allocation2] sm:$0xff]
        %v442 = vld [vmem:[#allocation8] sm:$0xff]
        %v443 = vld [vmem:[#allocation8 + $0x8] sm:$0xff]
        %v444 = vld [vmem:[#allocation8 + $0x10] sm:$0xff]
        %v445 = vld [vmem:[#allocation8 + $0x18] sm:$0xff]
        %v446 = vld [vmem:[#allocation8 + $0x20] sm:$0xff]
        %v447 = vld [vmem:[#allocation8 + $0x28] sm:$0xff]
        %v448 = vld [vmem:[#allocation8 + $0x30] sm:$0xff]
        %v449 = vld [vmem:[#allocation8 + $0x38] sm:$0xff]
        %v450 = vld [vmem:[#allocation8 + $0x40] sm:$0xff]
        %v451 = vld [vmem:[#allocation8 + $0x48] sm:$0xff]
        %v452 = vld [vmem:[#allocation8 + $0x50] sm:$0xff]
        %v453 = vld [vmem:[#allocation8 + $0x58] sm:$0xff]
        %v454 = vld [vmem:[#allocation8 + $0x60] sm:$0xff]
        %v455 = vld [vmem:[#allocation8 + $0x68] sm:$0xff]
        %v456 = vld [vmem:[#allocation8 + $0x70] sm:$0xff]
        %v457 = vld [vmem:[#allocation8 + $0x78] sm:$0xff]
        %v458 = vld [vmem:[#allocation8 + $0x80] sm:$0xff]
        %v459 = vld [vmem:[#allocation8 + $0x88] sm:$0xff]
        %v460 = vld [vmem:[#allocation8 + $0x90] sm:$0xff]
        %v461 = vld [vmem:[#allocation8 + $0x98] sm:$0xff]
        %v462 = vld [vmem:[#allocation8 + $0xa0] sm:$0xff]
        %v463 = vld [vmem:[#allocation8 + $0xa8] sm:$0xff]
        %v464 = vld [vmem:[#allocation8 + $0xb0] sm:$0xff]
        %v465 = vld [vmem:[#allocation8 + $0xb8] sm:$0xff]
        %v466 = vld [vmem:[#allocation8 + $0xc0] sm:$0xff]
        %v467 = vld [vmem:[#allocation8 + $0xc8] sm:$0xff]
        %v468 = vld [vmem:[#allocation8 + $0xd0] sm:$0xff]
        %v469 = vld [vmem:[#allocation8 + $0xd8] sm:$0xff]
        %v470 = vld [vmem:[#allocation8 + $0xe0] sm:$0xff]
        %v471 = vld [vmem:[#allocation8 + $0xe8] sm:$0xff]
        %v472 = vld [vmem:[#allocation8 + $0xf0] sm:$0xff]
        %v473 = vld [vmem:[#allocation8 + $0xf8] sm:$0xff]
        %474 = vmatprep.subr.mxu0 0.0
        %475 = vmatpush1.msra.mxu0 %v442
        %476 = vmatprep.subr.mxu0 0.0
        %477 = vmatpush1.msra.mxu0 %v443
        %478 = vmatprep.subr.mxu0 0.0
        %479 = vmatpush1.msra.mxu0 %v444
        %480 = vmatprep.subr.mxu0 0.0
        %481 = vmatpush1.msra.mxu0 %v445
        %482 = vmatprep.subr.mxu0 0.0
        %483 = vmatpush1.msra.mxu0 %v446
        %484 = vmatprep.subr.mxu0 0.0
        %485 = vmatpush1.msra.mxu0 %v447
        %486 = vmatprep.subr.mxu0 0.0
        %487 = vmatpush1.msra.mxu0 %v448
        %488 = vmatprep.subr.mxu0 0.0
        %489 = vmatpush1.msra.mxu0 %v449
        %490 = vmatprep.subr.mxu0 0.0
        %491 = vmatpush1.msra.mxu0 %v450
        %492 = vmatprep.subr.mxu0 0.0
        %493 = vmatpush1.msra.mxu0 %v451
        %494 = vmatprep.subr.mxu0 0.0
        %495 = vmatpush1.msra.mxu0 %v452
        %496 = vmatprep.subr.mxu0 0.0
        %497 = vmatpush1.msra.mxu0 %v453
        %498 = vmatprep.subr.mxu0 0.0
        %499 = vmatpush1.msra.mxu0 %v454
        %500 = vmatprep.subr.mxu0 0.0
        %501 = vmatpush1.msra.mxu0 %v455
        %502 = vmatprep.subr.mxu0 0.0
        %503 = vmatpush1.msra.mxu0 %v456
        %504 = vmatprep.subr.mxu0 0.0
        %505 = vmatpush1.msra.mxu0 %v457
        %506 = vmatprep.subr.mxu0 0.0
        %507 = vmatpush1.msra.mxu0 %v458
        %508 = vmatprep.subr.mxu0 0.0
        %509 = vmatpush1.msra.mxu0 %v459
        %510 = vmatprep.subr.mxu0 0.0
        %511 = vmatpush1.msra.mxu0 %v460
        %512 = vmatprep.subr.mxu0 0.0
        %513 = vmatpush1.msra.mxu0 %v461
        %514 = vmatprep.subr.mxu0 0.0
        %515 = vmatpush1.msra.mxu0 %v462
        %516 = vmatprep.subr.mxu0 0.0
        %517 = vmatpush1.msra.mxu0 %v463
        %518 = vmatprep.subr.mxu0 0.0
        %519 = vmatpush1.msra.mxu0 %v464
        %520 = vmatprep.subr.mxu0 0.0
        %521 = vmatpush1.msra.mxu0 %v465
        %522 = vmatprep.subr.mxu0 0.0
        %523 = vmatpush1.msra.mxu0 %v466
        %524 = vmatprep.subr.mxu0 0.0
        %525 = vmatpush1.msra.mxu0 %v467
        %526 = vmatprep.subr.mxu0 0.0
        %527 = vmatpush1.msra.mxu0 %v468
        %528 = vmatprep.subr.mxu0 0.0
        %529 = vmatpush1.msra.mxu0 %v469
        %530 = vmatprep.subr.mxu0 0.0
        %531 = vmatpush1.msra.mxu0 %v470
        %532 = vmatprep.subr.mxu0 0.0
        %533 = vmatpush1.msra.mxu0 %v471
        %534 = vmatprep.subr.mxu0 0.0
        %535 = vmatpush1.msra.mxu0 %v472
        %536 = vmatprep.subr.mxu0 0.0
        %537 = vmatpush1.msra.mxu0 %v473
        %538 = vmatprep.mubr.f32.mxu0 %v440
        %539 = vmatmul.mubr.f32.gmra.mrb[0].mxu0 %v439
        %v540 = vpop.f32.mrb[0].mxu0
        %v541 = vadd.f32 0.0, %v540
        %v542 = vpop.f32.mrb[0].mxu0
        %543 = vdwg.mxu0
        %v544 = vadd.f32 %v441, %v541
        %545 = vst [vmem:[#allocation2] sm:$0xff] %v544
        // Predicated region
        $region57: #{tpu_custom_call.1} parent=39 // pred_check
          %p546 = pneg %p318
        $region58: #{tpu_custom_call.1} parent=39 // pred_check_branch
          %548 = sbr.rel (%p546) target = $region60
        $region59: #{tpu_custom_call.1} parent=39 // pred_region
          %v549 = vld [vmem:[#allocation2] sm:$0xff]
          %v550 = vld [vmem:[%s4] sm:$0x1]
          %v552 = vlaneseq
          %v553 = vshrl.u32 %v552, 7
          %v554 = vsub.s32 0, %v553
          %v555 = vrot.slane %v550, %v554
          %v557 = vadd.f32 %v549, %v555
          %v558 = vmax.f32 %v557, 0.0
          %559 = vst [vmem:[%s310] sm:$0xff] %v558
        $region60: #{tpu_custom_call.1} parent=39 // pred_fallthru
          _
        %s560 = sand.u32 %s168, 1
        %s561 = scalar_lea.sflag [#allocation5], %s560
        %s562 = sand.u32 %s168, 1
        %s563 = smul.addr %s562, 8
        %s564 = scalar_lea.vmem [#allocation9], %s563
        // Predicated region
        $region61: #{tpu_custom_call.1} parent=39 // pred_check
          %p565 = pneg %p178
        $region62: #{tpu_custom_call.1} parent=39 // pred_check_branch
          %567 = sbr.rel (%p565) target = $region64
        $region63: #{tpu_custom_call.1} parent=39 // pred_region
          %s569 = ssub.s32 128, 128
          %570 = vsyncadd %s561, %s569
          %s571 = smul.addr %s27, 128
          %s572 = scalar_lea.hbm %s5, %s571
          %s574 = sshll.u32 %s564, 4
          %s575 = int_to_ptr.vmem [resolvable:$true] %s574
          %577 = dma.vmem_to_hbm [thread:$0]  %s575, 128, %s572, %s561
        $region64: #{tpu_custom_call.1} parent=39 // pred_fallthru
          _
      $region40: #{tpu_custom_call.1} parent=5 // pred_fallthru
        _
      %p578 = scmp.le.s32.totalorder 2, %s18
      // Predicated region
      $region65: #{tpu_custom_call.1} parent=5 // pred_check
        %p579 = pneg %p578
      $region66: #{tpu_custom_call.1} parent=5 // pred_check_branch
        %581 = sbr.rel (%p579) target = $region68
      $region67: #{tpu_custom_call.1} parent=5 // pred_region
        %s582 = ssub.s32 %s18, 2
        // Predicated region
        $region69: #{tpu_custom_call.1} parent=67 // pred_check
          %p583 = pneg %p184
        $region70: #{tpu_custom_call.1} parent=67 // pred_check_branch
          %585 = sbr.rel (%p583) target = $region72
        $region71: #{tpu_custom_call.1} parent=67 // pred_region
          %s586 = sand.u32 %s169, 1
          %s587 = scalar_lea.sflag [#allocation5], %s586
          %s588 = sand.u32 %s169, 1
          %s589 = smul.addr %s588, 8
          %s590 = scalar_lea.vmem [#allocation9], %s589
          %591 = dma.done %s587, 128
        $region72: #{tpu_custom_call.1} parent=67 // pred_fallthru
          _
      $region68: #{tpu_custom_call.1} parent=5 // pred_fallthru
        _
    $region6: #{tpu_custom_call.1} parent=1 // loop_footer
      %s22 = sadd.s32 1, %s18
    $region7: #{tpu_custom_call.1} parent=1 // loop_footer_branch
      %17 = sbr.rel target = $region3
    $region8: #{tpu_custom_call.1} parent=1 // loop_exit
      _
    %592 = vsyncpa [#allocation4], 1
    %s593 = scalar_lea.sflag [#allocation4], 1
    %594 = vsyncpa %s593, 1
    %595 = vsyncpa [#allocation7], 1
    %596 = vsyncpa [#allocation5], 1
    %s597 = scalar_lea.sflag [#allocation5], 1
    %598 = vsyncpa %s597, 1

// kernel: tpu_custom_call.1
$region0: #{tpu_custom_call.1}
  #allocation0 [shape = 'u32[]', space=smem, size = 0x4, offset = 0x4, fixed_abs, tag = 'smem constant byte address 0x4 - core index']
  #allocation1 [shape = 'u32[144,128]{1,0:T(1,128)}', space=vmem, size = 0x12000, scoped, tag = 'internal scratch']
  #allocation2 [shape = 'f32[8,128]{1,0:T(8,128)}', space=vmem, size = 0x1000, scoped, tag = 'scratch operand']
  %s0 = inlined_call_operand.hbm [shape: f32[16,128], index: 0, kind: input, shape index: {}]
  %s1 = inlined_call_operand.hbm [shape: f32[128,256], index: 1, kind: input, shape index: {}]
  %s2 = inlined_call_operand.vmem [shape: f32[1,256], index: 2, kind: input, shape index: {}]
  %s3 = inlined_call_operand.hbm [shape: f32[256,128], index: 3, kind: input, shape index: {}]
  %s4 = inlined_call_operand.vmem [shape: f32[1,128], index: 4, kind: input, shape index: {}]
  %s5 = inlined_call_operand.hbm [shape: f32[16,128], index: 5, kind: output, shape index: {}]
  %s6 = sld [smem:[#allocation0]]
  $region73: #{tpu_custom_call.1} parent=0
    _
  %s8 = ssub.s32 1, %s6
  %s9 = scalar_select 0, %s8, %s6
  $region1: #{tpu_custom_call.1} parent=0
    #allocation3 [shape = 'u8[8192]{0}', space=vmem, size = 0x2000, scoped, tag = 'input window, operand 0']
    #allocation4 [shape = 's32[2]{0}', space=sflag, size = 0x8, scoped, tag = 'scoped memory for tpu_custom_call.1']
    #allocation5 [shape = 's32[2]{0}', space=sflag, size = 0x8, scoped, tag = 'scoped memory for tpu_custom_call.1']
    #allocation6 [shape = 'u8[131072]{0}', space=vmem, size = 0x20000, scoped, tag = 'input window, operand 1, single buffered']
    #allocation7 [shape = 's32[1]{0}', space=sflag, size = 0x4, scoped, tag = 'scoped memory for tpu_custom_call.1']
    #allocation8 [shape = 'u8[131072]{0}', space=vmem, size = 0x20000, scoped, tag = 'input window, operand 3, single buffered']
    #allocation9 [shape = 'u8[8192]{0}', space=vmem, size = 0x2000, scoped, tag = 'output window, operand 0']
    %10 = vsyncpa [#allocation4], 0
    %s11 = scalar_lea.sflag [#allocation4], 1
    %12 = vsyncpa %s11, 0
    %13 = vsyncpa [#allocation7], 0
    %14 = vsyncpa [#allocation5], 0
    %s15 = scalar_lea.sflag [#allocation5], 1
    %16 = vsyncpa %s15, 0
    loop: start=0, step=1, limit=4
    $region2: #{tpu_custom_call.1} parent=1 // loop_pre_header
      _
    $region3: #{tpu_custom_call.1} parent=1 // loop_header
      %s18 = sphi 0, %s22
      %p19 = scmp.ge.s32.totalorder %s18, 4
      %s25 = sphi 0, %s37
      %s26 = sphi 0, %s33
      %s27 = sphi 0, %s25
      %s28 = sphi 0, %s26
      %s29 = sphi 0, %s27
      %s30 = sphi 0, %s28
      %s40 = sphi 0, %s42
      %s43 = sphi 0, %s40
      %s44 = sphi 0, %s43
      %s60 = sphi 0, %s44
      %s66 = sphi 0, %s68
      %s69 = sphi 0, %s66
      %s70 = sphi 0, %s69
      %s86 = sphi 0, %s70
      %s92 = sphi 0, %s94
      %s95 = sphi 0, %s92
      %s96 = sphi 0, %s95
      %s112 = sphi 0, %s96
      %s118 = sphi 0, %s120
      %s121 = sphi 0, %s118
      %s122 = sphi 0, %s121
      %s138 = sphi 0, %s122
      %s142 = sphi 0, %s142
      %s144 = sphi 0, %s142
      %s145 = sphi 0, %s144
      %s159 = sphi 0, %s145
      %s165 = sphi 0, %s167
      %s168 = sphi 0, %s165
      %s169 = sphi 0, %s168
      %s185 = sphi 0, %s169
    $region4: #{tpu_custom_call.1} parent=1 // loop_header_branch
      %21 = sbr.rel (%p19) target = $region8
    $region5: #{tpu_custom_call.1} parent=1 // loop_body
      %s23 = ssub.s32 %s18, 1
      %s24 = ssub.s32 %s18, 2
      %s31 = sadd.s32 1, %s26
      %p32 = scmp.ge.s32.totalorder %s31, 1
      %s33 = scalar_select %p32, 0, %s31
      %s34 = sadd.s32 1, %s25
      %s35 = scalar_select %p32, %s34, %s25
      %p36 = scmp.ge.s32.totalorder %s35, 2
      %s37 = scalar_select %p36, 0, %s35
      %s38 = ssub.s32 %s25, %s37
      %p39 = scmp.eq.s32.totalorder %s38, 0
      %s41 = sadd.s32 %s40, 1
      %s42 = scalar_select %p39, %s40, %s41
      %p45 = pneg %p39
      %p46 = scmp.eq.s32.totalorder %s18, 1
      %p47 = por %p45, %p46
      %p48 = scmp.ne.s32.totalorder %s40, %s43
      %p49 = scmp.eq.s32.totalorder %s18, 0
      %p50 = por %p48, %p49
      %p51 = scmp.ne.s32.totalorder %s40, %s43
      %p52 = scmp.eq.s32.totalorder %s23, 1
      %p53 = por %p51, %p52
      %p54 = scmp.ne.s32.totalorder %s43, %s44
      %p55 = scmp.eq.s32.totalorder %s23, 0
      %p56 = por %p54, %p55
      %p57 = scmp.ne.s32.totalorder %s43, %s44
      %p58 = scmp.eq.s32.totalorder %s24, 1
      %p59 = por %p57, %p58
      %p61 = scmp.ne.s32.totalorder %s44, %s60
      %p62 = scmp.eq.s32.totalorder %s24, 0
      %p63 = por %p61, %p62
      %s64 = ssub.s32 %s26, %s33
      %p65 = scmp.eq.s32.totalorder %s64, 0
      %s67 = sadd.s32 %s66, 1
      %s68 = scalar_select %p65, %s66, %s67
      %p71 = pneg %p65
      %p72 = scmp.eq.s32.totalorder %s18, 1
      %p73 = por %p71, %p72
      %p74 = scmp.ne.s32.totalorder %s66, %s69
      %p75 = scmp.eq.s32.totalorder %s18, 0
      %p76 = por %p74, %p75
      %p77 = scmp.ne.s32.totalorder %s66, %s69
      %p78 = scmp.eq.s32.totalorder %s23, 1
      %p79 = por %p77, %p78
      %p80 = scmp.ne.s32.totalorder %s69, %s70
      %p81 = scmp.eq.s32.totalorder %s23, 0
      %p82 = por %p80, %p81
      %p83 = scmp.ne.s32.totalorder %s69, %s70
      %p84 = scmp.eq.s32.totalorder %s24, 1
      %p85 = por %p83, %p84
      %p87 = scmp.ne.s32.totalorder %s70, %s86
      %p88 = scmp.eq.s32.totalorder %s24, 0
      %p89 = por %p87, %p88
      %s90 = ssub.s32 %s26, %s33
      %p91 = scmp.eq.s32.totalorder %s90, 0
      %s93 = sadd.s32 %s92, 1
      %s94 = scalar_select %p91, %s92, %s93
      %p97 = pneg %p91
      %p98 = scmp.eq.s32.totalorder %s18, 1
      %p99 = por %p97, %p98
      %p100 = scmp.ne.s32.totalorder %s92, %s95
      %p101 = scmp.eq.s32.totalorder %s18, 0
      %p102 = por %p100, %p101
      %p103 = scmp.ne.s32.totalorder %s92, %s95
      %p104 = scmp.eq.s32.totalorder %s23, 1
      %p105 = por %p103, %p104
      %p106 = scmp.ne.s32.totalorder %s95, %s96
      %p107 = scmp.eq.s32.totalorder %s23, 0
      %p108 = por %p106, %p107
      %p109 = scmp.ne.s32.totalorder %s95, %s96
      %p110 = scmp.eq.s32.totalorder %s24, 1
      %p111 = por %p109, %p110
      %p113 = scmp.ne.s32.totalorder %s96, %s112
      %p114 = scmp.eq.s32.totalorder %s24, 0
      %p115 = por %p113, %p114
      %s116 = ssub.s32 %s26, %s33
      %p117 = scmp.eq.s32.totalorder %s116, 0
      %s119 = sadd.s32 %s118, 1
      %s120 = scalar_select %p117, %s118, %s119
      %p123 = pneg %p117
      %p124 = scmp.eq.s32.totalorder %s18, 1
      %p125 = por %p123, %p124
      %p126 = scmp.ne.s32.totalorder %s118, %s121
      %p127 = scmp.eq.s32.totalorder %s18, 0
      %p128 = por %p126, %p127
      %p129 = scmp.ne.s32.totalorder %s118, %s121
      %p130 = scmp.eq.s32.totalorder %s23, 1
      %p131 = por %p129, %p130
      %p132 = scmp.ne.s32.totalorder %s121, %s122
      %p133 = scmp.eq.s32.totalorder %s23, 0
      %p134 = por %p132, %p133
      %p135 = scmp.ne.s32.totalorder %s121, %s122
      %p136 = scmp.eq.s32.totalorder %s24, 1
      %p137 = por %p135, %p136
      %p139 = scmp.ne.s32.totalorder %s122, %s138
      %p140 = scmp.eq.s32.totalorder %s24, 0
      %p141 = por %p139, %p140
      %s143 = sadd.s32 %s142, 1
      %p146 = scmp.eq.s32.totalorder %s18, 1
      %p147 = scmp.ne.s32.totalorder %s142, %s144
      %p148 = scmp.eq.s32.totalorder %s18, 0
      %p149 = por %p147, %p148
      %p150 = scmp.ne.s32.totalorder %s142, %s144
      %p151 = scmp.eq.s32.totalorder %s23, 1
      %p152 = por %p150, %p151
      %p153 = scmp.ne.s32.totalorder %s144, %s145
      %p154 = scmp.eq.s32.totalorder %s23, 0
      %p155 = por %p153, %p154
      %p156 = scmp.ne.s32.totalorder %s144, %s145
      %p157 = scmp.eq.s32.totalorder %s24, 1
      %p158 = por %p156, %p157
      %p160 = scmp.ne.s32.totalorder %s145, %s159
      %p161 = scmp.eq.s32.totalorder %s24, 0
      %p162 = por %p160, %p161
      %s163 = ssub.s32 %s25, %s37
      %p164 = scmp.eq.s32.totalorder %s163, 0
      %s166 = sadd.s32 %s165, 1
      %s167 = scalar_select %p164, %s165, %s166
      %p170 = pneg %p164
      %p171 = scmp.eq.s32.totalorder %s18, 1
      %p172 = por %p170, %p171
      %p173 = scmp.ne.s32.totalorder %s165, %s168
      %p174 = scmp.eq.s32.totalorder %s18, 0
      %p175 = por %p173, %p174
      %p176 = scmp.ne.s32.totalorder %s165, %s168
      %p177 = scmp.eq.s32.totalorder %s23, 1
      %p178 = por %p176, %p177
      %p179 = scmp.ne.s32.totalorder %s168, %s169
      %p180 = scmp.eq.s32.totalorder %s23, 0
      %p181 = por %p179, %p180
      %p182 = scmp.ne.s32.totalorder %s168, %s169
      %p183 = scmp.eq.s32.totalorder %s24, 1
      %p184 = por %p182, %p183
      %p186 = scmp.ne.s32.totalorder %s169, %s185
      %p187 = scmp.eq.s32.totalorder %s24, 0
      %p188 = por %p186, %p187
      %p189 = scmp.le.s32.totalorder 1, %s18
      %p190 = scmp.lt.s32.totalorder %s18, 3
      %p191 = pnand %p189, %p190
      %p192 = pneg %p191
      // Predicated region
      $region9: #{tpu_custom_call.1} parent=5 // pred_check
        _
      $region10: #{tpu_custom_call.1} parent=5 // pred_check_branch
        %194 = sbr.rel (%p191) target = $region12
      $region11: #{tpu_custom_call.1} parent=5 // pred_region
        %s195 = ssub.s32 %s18, 1
        // Predicated region
        $region13: #{tpu_custom_call.1} parent=11 // pred_check
          %p196 = pneg %p82
        $region14: #{tpu_custom_call.1} parent=11 // pred_check_branch
          %198 = sbr.rel (%p196) target = $region16
        $region15: #{tpu_custom_call.1} parent=11 // pred_region
          %s199 = smul.u32 2, %s28
          %s201 = ssub.s32 4096, 4096
          %202 = vsyncadd [#allocation7], %s201
          %s203 = smul.addr %s199, 128
          %s204 = scalar_lea.hbm %s1, %s203
          %s205 = sshll.u32 [#allocation6], 4
          %s206 = int_to_ptr.vmem [resolvable:$true] %s205
          %211 = dma.hbm_to_vmem [thread:$0]  %s204, 4096, %s206, [#allocation7], 256, 256, 16
        $region16: #{tpu_custom_call.1} parent=11 // pred_fallthru
          _
        // Predicated region
        $region17: #{tpu_custom_call.1} parent=11 // pred_check
          %p212 = pneg %p108
        $region18: #{tpu_custom_call.1} parent=11 // pred_check_branch
          %214 = sbr.rel (%p212) target = $region20
        $region19: #{tpu_custom_call.1} parent=11 // pred_region
          %s215 = smul.u32 2, %s28
          %p216 = scmp.lt.s32.totalorder %s215, 1
          %s217 = scalar_select %p216, %s215, 1
          %s218 = scalar_lea.vmem %s2, %s217
          %s219 = smul.u32 2, %s28
        $region20: #{tpu_custom_call.1} parent=11 // pred_fallthru
          _
        // Predicated region
        $region21: #{tpu_custom_call.1} parent=11 // pred_check
          %p220 = pneg %p134
        $region22: #{tpu_custom_call.1} parent=11 // pred_check_branch
          %222 = sbr.rel (%p220) target = $region24
        $region23: #{tpu_custom_call.1} parent=11 // pred_region
          %s223 = smul.u32 32, %s28
          %s225 = ssub.s32 4096, 4096
          %226 = vsyncadd [#allocation7], %s225
          %s227 = smul.addr %s223, 128
          %s228 = scalar_lea.hbm %s3, %s227
          %s229 = sshll.u32 [#allocation8], 4
          %s230 = int_to_ptr.vmem [resolvable:$true] %s229
          %235 = dma.hbm_to_vmem [thread:$0]  %s228, 4096, %s230, [#allocation7], 128, 128, 8
        $region24: #{tpu_custom_call.1} parent=11 // pred_fallthru
          _
        // Predicated region
        $region25: #{tpu_custom_call.1} parent=11 // pred_check
          %p236 = pneg %p155
        $region26: #{tpu_custom_call.1} parent=11 // pred_check_branch
          %238 = sbr.rel (%p236) target = $region28
        $region27: #{tpu_custom_call.1} parent=11 // pred_region
          _
        $region28: #{tpu_custom_call.1} parent=11 // pred_fallthru
          _
      $region12: #{tpu_custom_call.1} parent=5 // pred_fallthru
        _
      %p239 = scmp.lt.s32.totalorder %s18, 2
      // Predicated region
      $region29: #{tpu_custom_call.1} parent=5 // pred_check
        %p240 = pneg %p239
      $region30: #{tpu_custom_call.1} parent=5 // pred_check_branch
        %242 = sbr.rel (%p240) target = $region32
      $region31: #{tpu_custom_call.1} parent=5 // pred_region
        // Predicated region
        $region33: #{tpu_custom_call.1} parent=31 // pred_check
          %p243 = pneg %p50
        $region34: #{tpu_custom_call.1} parent=31 // pred_check_branch
          %245 = sbr.rel (%p243) target = $region36
        $region35: #{tpu_custom_call.1} parent=31 // pred_region
          %s246 = sand.u32 %s40, 1
          %s247 = scalar_lea.sflag [#allocation4], %s246
          %s248 = sand.u32 %s40, 1
          %s249 = smul.addr %s248, 8
          %s250 = scalar_lea.vmem [#allocation3], %s249
          %s252 = ssub.s32 128, 128
          %253 = vsyncadd %s247, %s252
          %s254 = smul.addr %s25, 128
          %s255 = scalar_lea.hbm %s0, %s254
          %s257 = sshll.u32 %s250, 4
          %s258 = int_to_ptr.vmem [resolvable:$true] %s257
          %260 = dma.hbm_to_vmem [thread:$0]  %s255, 128, %s258, %s247
        $region36: #{tpu_custom_call.1} parent=31 // pred_fallthru
          _
      $region32: #{tpu_custom_call.1} parent=5 // pred_fallthru
        _
      %p261 = scmp.le.s32.totalorder 1, %s18
      %p262 = scmp.lt.s32.totalorder %s18, 3
      %p263 = pnand %p261, %p262
      %p264 = pneg %p263
      // Predicated region
      $region37: #{tpu_custom_call.1} parent=5 // pred_check
        _
      $region38: #{tpu_custom_call.1} parent=5 // pred_check_branch
        %266 = sbr.rel (%p263) target = $region40
      $region39: #{tpu_custom_call.1} parent=5 // pred_region
        %s267 = ssub.s32 %s18, 1
        %s268 = sand.u32 %s43, 1
        %s269 = scalar_lea.sflag [#allocation4], %s268
        %s270 = sand.u32 %s43, 1
        %s271 = smul.addr %s270, 8
        %s272 = scalar_lea.vmem [#allocation3], %s271
        // Predicated region
        $region41: #{tpu_custom_call.1} parent=39 // pred_check
          %p273 = pneg %p56
        $region42: #{tpu_custom_call.1} parent=39 // pred_check_branch
          %275 = sbr.rel (%p273) target = $region44
        $region43: #{tpu_custom_call.1} parent=39 // pred_region
          %276 = dma.done %s269, 128
        $region44: #{tpu_custom_call.1} parent=39 // pred_fallthru
          _
        // Predicated region
        $region45: #{tpu_custom_call.1} parent=39 // pred_check
          %p277 = pneg %p82
        $region46: #{tpu_custom_call.1} parent=39 // pred_check_branch
          %279 = sbr.rel (%p277) target = $region48
        $region47: #{tpu_custom_call.1} parent=39 // pred_region
          %280 = dma.done [#allocation7], 4096
        $region48: #{tpu_custom_call.1} parent=39 // pred_fallthru
          _
        // Predicated region
        $region49: #{tpu_custom_call.1} parent=39 // pred_check
          %p281 = pneg %p134
        $region50: #{tpu_custom_call.1} parent=39 // pred_check_branch
          %283 = sbr.rel (%p281) target = $region52
        $region51: #{tpu_custom_call.1} parent=39 // pred_region
          %284 = dma.done [#allocation7], 4096
        $region52: #{tpu_custom_call.1} parent=39 // pred_fallthru
          _
        %s285 = sand.u32 %s43, 1
        %s286 = scalar_lea.sflag [#allocation4], %s285
        %s287 = sand.u32 %s43, 1
        %s288 = smul.addr %s287, 8
        %s289 = scalar_lea.vmem [#allocation3], %s288
        %p290 = pneg %p56
        %p291 = pneg %p53
        %p292 = pneg %p82
        %p293 = pneg %p79
        %s294 = smul.u32 2, %s28
        %p295 = scmp.lt.s32.totalorder %s294, 1
        %s296 = scalar_select %p295, %s294, 1
        %s297 = scalar_lea.vmem %s2, %s296
        %p298 = pneg %p108
        %p299 = pneg %p105
        %p300 = pneg %p134
        %p301 = pneg %p131
        %p302 = pneg %p155
        %p303 = pneg %p152
        %p304 = pneg %p181
        %p305 = pneg %p178
        %s306 = sand.u32 %s168, 1
        %s307 = scalar_lea.sflag [#allocation5], %s306
        %s308 = sand.u32 %s168, 1
        %s309 = smul.addr %s308, 8
        %s310 = scalar_lea.vmem [#allocation9], %s309
        %s311 = smul.u32 2, %s28
        %s312 = smul.u32 2, %s28
        %p313 = scmp.lt.s32.totalorder %s312, 1
        %s314 = scalar_select %p313, %s312, 1
        %s315 = scalar_lea.vmem %s2, %s314
        %s316 = smul.u32 2, %s28
        %s317 = smul.u32 32, %s28
        %p318 = scmp.eq.s32.totalorder %s28, 0
        // Predicated region
        $region53: #{tpu_custom_call.1} parent=39 // pred_check
          %p319 = pneg %p318
        $region54: #{tpu_custom_call.1} parent=39 // pred_check_branch
          %321 = sbr.rel (%p319) target = $region56
        $region55: #{tpu_custom_call.1} parent=39 // pred_region
          %322 = vst [vmem:[#allocation2] sm:$0xff] 0.0
        $region56: #{tpu_custom_call.1} parent=39 // pred_fallthru
          _
        %v323 = vld [vmem:[%s272] sm:$0xff]
        %v324 = vld [vmem:[#allocation6] sm:$0xff]
        %v325 = vld [vmem:[#allocation6 + $0x8] sm:$0xff]
        %v326 = vld [vmem:[#allocation6 + $0x10] sm:$0xff]
        %v327 = vld [vmem:[#allocation6 + $0x18] sm:$0xff]
        %v328 = vld [vmem:[#allocation6 + $0x20] sm:$0xff]
        %v329 = vld [vmem:[#allocation6 + $0x28] sm:$0xff]
        %v330 = vld [vmem:[#allocation6 + $0x30] sm:$0xff]
        %v331 = vld [vmem:[#allocation6 + $0x38] sm:$0xff]
        %v332 = vld [vmem:[#allocation6 + $0x40] sm:$0xff]
        %v333 = vld [vmem:[#allocation6 + $0x48] sm:$0xff]
        %v334 = vld [vmem:[#allocation6 + $0x50] sm:$0xff]
        %v335 = vld [vmem:[#allocation6 + $0x58] sm:$0xff]
        %v336 = vld [vmem:[#allocation6 + $0x60] sm:$0xff]
        %v337 = vld [vmem:[#allocation6 + $0x68] sm:$0xff]
        %v338 = vld [vmem:[#allocation6 + $0x70] sm:$0xff]
        %v339 = vld [vmem:[#allocation6 + $0x78] sm:$0xff]
        %v340 = vld [vmem:[#allocation6 + $0x80] sm:$0xff]
        %v341 = vld [vmem:[#allocation6 + $0x88] sm:$0xff]
        %v342 = vld [vmem:[#allocation6 + $0x90] sm:$0xff]
        %v343 = vld [vmem:[#allocation6 + $0x98] sm:$0xff]
        %v344 = vld [vmem:[#allocation6 + $0xa0] sm:$0xff]
        %v345 = vld [vmem:[#allocation6 + $0xa8] sm:$0xff]
        %v346 = vld [vmem:[#allocation6 + $0xb0] sm:$0xff]
        %v347 = vld [vmem:[#allocation6 + $0xb8] sm:$0xff]
        %v348 = vld [vmem:[#allocation6 + $0xc0] sm:$0xff]
        %v349 = vld [vmem:[#allocation6 + $0xc8] sm:$0xff]
        %v350 = vld [vmem:[#allocation6 + $0xd0] sm:$0xff]
        %v351 = vld [vmem:[#allocation6 + $0xd8] sm:$0xff]
        %v352 = vld [vmem:[#allocation6 + $0xe0] sm:$0xff]
        %v353 = vld [vmem:[#allocation6 + $0xe8] sm:$0xff]
        %v354 = vld [vmem:[#allocation6 + $0xf0] sm:$0xff]
        %v355 = vld [vmem:[#allocation6 + $0xf8] sm:$0xff]
        %v356 = vld [vmem:[%s315] sm:$0x3]
        %v358 = vlaneseq
        %v359 = vshrl.u32 %v358, 7
        %v360 = vsub.s32 0, %v359
        %v361 = vrot.slane %v356, %v360
        %v362 = vlaneseq
        %v363 = vshrl.u32 %v362, 7
        %v364 = vsub.s32 1, %v363
        %v365 = vrot.slane %v356, %v364
        %368 = vmatprep.subr.mxu0 %v325
        %369 = vmatpush1.msra.mxu0 %v324
        %370 = vmatprep.subr.mxu0 %v327
        %371 = vmatpush1.msra.mxu0 %v326
        %372 = vmatprep.subr.mxu0 %v329
        %373 = vmatpush1.msra.mxu0 %v328
        %374 = vmatprep.subr.mxu0 %v331
        %375 = vmatpush1.msra.mxu0 %v330
        %376 = vmatprep.subr.mxu0 %v333
        %377 = vmatpush1.msra.mxu0 %v332
        %378 = vmatprep.subr.mxu0 %v335
        %379 = vmatpush1.msra.mxu0 %v334
        %380 = vmatprep.subr.mxu0 %v337
        %381 = vmatpush1.msra.mxu0 %v336
        %382 = vmatprep.subr.mxu0 %v339
        %383 = vmatpush1.msra.mxu0 %v338
        %384 = vmatprep.subr.mxu0 %v341
        %385 = vmatpush1.msra.mxu0 %v340
        %386 = vmatprep.subr.mxu0 %v343
        %387 = vmatpush1.msra.mxu0 %v342
        %388 = vmatprep.subr.mxu0 %v345
        %389 = vmatpush1.msra.mxu0 %v344
        %390 = vmatprep.subr.mxu0 %v347
        %391 = vmatpush1.msra.mxu0 %v346
        %392 = vmatprep.subr.mxu0 %v349
        %393 = vmatpush1.msra.mxu0 %v348
        %394 = vmatprep.subr.mxu0 %v351
        %395 = vmatpush1.msra.mxu0 %v350
        %396 = vmatprep.subr.mxu0 %v353
        %397 = vmatpush1.msra.mxu0 %v352
        %398 = vmatprep.subr.mxu0 %v355
        %399 = vmatpush1.msra.mxu0 %v354
        %400 = vmatprep.subr.mxu0 0.0
        %401 = vmatpush1.msra.mxu0 0.0
        %402 = vmatprep.subr.mxu0 0.0
        %403 = vmatpush1.msra.mxu0 0.0
        %404 = vmatprep.subr.mxu0 0.0
        %405 = vmatpush1.msra.mxu0 0.0
        %406 = vmatprep.subr.mxu0 0.0
        %407 = vmatpush1.msra.mxu0 0.0
        %408 = vmatprep.subr.mxu0 0.0
        %409 = vmatpush1.msra.mxu0 0.0
        %410 = vmatprep.subr.mxu0 0.0
        %411 = vmatpush1.msra.mxu0 0.0
        %412 = vmatprep.subr.mxu0 0.0
        %413 = vmatpush1.msra.mxu0 0.0
        %414 = vmatprep.subr.mxu0 0.0
        %415 = vmatpush1.msra.mxu0 0.0
        %416 = vmatprep.subr.mxu0 0.0
        %417 = vmatpush1.msra.mxu0 0.0
        %418 = vmatprep.subr.mxu0 0.0
        %419 = vmatpush1.msra.mxu0 0.0
        %420 = vmatprep.subr.mxu0 0.0
        %421 = vmatpush1.msra.mxu0 0.0
        %422 = vmatprep.subr.mxu0 0.0
        %423 = vmatpush1.msra.mxu0 0.0
        %424 = vmatprep.subr.mxu0 0.0
        %425 = vmatpush1.msra.mxu0 0.0
        %426 = vmatprep.subr.mxu0 0.0
        %427 = vmatpush1.msra.mxu0 0.0
        %428 = vmatprep.subr.mxu0 0.0
        %429 = vmatpush1.msra.mxu0 0.0
        %430 = vmatprep.subr.mxu0 0.0
        %431 = vmatpush1.msra.mxu0 0.0
        %432 = vmatprep.mubr.f32.mxu0 0.0
        %433 = vmatmul.mubr.f32.gmra.mrb[0].mxu0 %v323
        %v434 = vpop.f32.mrb[0].mxu0
        %v435 = vadd.f32 %v361, %v434
        %v436 = vpop.f32.mrb[0].mxu0
        %v437 = vadd.f32 %v365, %v436
        %438 = vdwg.mxu0
        %v439 = vmax.f32 %v435, 0.0
        %v440 = vmax.f32 %v437, 0.0
        %v441 = vld [vmem:[#allocation2] sm:$0xff]
        %v442 = vld [vmem:[#allocation8] sm:$0xff]
        %v443 = vld [vmem:[#allocation8 + $0x8] sm:$0xff]
        %v444 = vld [vmem:[#allocation8 + $0x10] sm:$0xff]
        %v445 = vld [vmem:[#allocation8 + $0x18] sm:$0xff]
        %v446 = vld [vmem:[#allocation8 + $0x20] sm:$0xff]
        %v447 = vld [vmem:[#allocation8 + $0x28] sm:$0xff]
        %v448 = vld [vmem:[#allocation8 + $0x30] sm:$0xff]
        %v449 = vld [vmem:[#allocation8 + $0x38] sm:$0xff]
        %v450 = vld [vmem:[#allocation8 + $0x40] sm:$0xff]
        %v451 = vld [vmem:[#allocation8 + $0x48] sm:$0xff]
        %v452 = vld [vmem:[#allocation8 + $0x50] sm:$0xff]
        %v453 = vld [vmem:[#allocation8 + $0x58] sm:$0xff]
        %v454 = vld [vmem:[#allocation8 + $0x60] sm:$0xff]
        %v455 = vld [vmem:[#allocation8 + $0x68] sm:$0xff]
        %v456 = vld [vmem:[#allocation8 + $0x70] sm:$0xff]
        %v457 = vld [vmem:[#allocation8 + $0x78] sm:$0xff]
        %v458 = vld [vmem:[#allocation8 + $0x80] sm:$0xff]
        %v459 = vld [vmem:[#allocation8 + $0x88] sm:$0xff]
        %v460 = vld [vmem:[#allocation8 + $0x90] sm:$0xff]
        %v461 = vld [vmem:[#allocation8 + $0x98] sm:$0xff]
        %v462 = vld [vmem:[#allocation8 + $0xa0] sm:$0xff]
        %v463 = vld [vmem:[#allocation8 + $0xa8] sm:$0xff]
        %v464 = vld [vmem:[#allocation8 + $0xb0] sm:$0xff]
        %v465 = vld [vmem:[#allocation8 + $0xb8] sm:$0xff]
        %v466 = vld [vmem:[#allocation8 + $0xc0] sm:$0xff]
        %v467 = vld [vmem:[#allocation8 + $0xc8] sm:$0xff]
        %v468 = vld [vmem:[#allocation8 + $0xd0] sm:$0xff]
        %v469 = vld [vmem:[#allocation8 + $0xd8] sm:$0xff]
        %v470 = vld [vmem:[#allocation8 + $0xe0] sm:$0xff]
        %v471 = vld [vmem:[#allocation8 + $0xe8] sm:$0xff]
        %v472 = vld [vmem:[#allocation8 + $0xf0] sm:$0xff]
        %v473 = vld [vmem:[#allocation8 + $0xf8] sm:$0xff]
        %474 = vmatprep.subr.mxu0 0.0
        %475 = vmatpush1.msra.mxu0 %v442
        %476 = vmatprep.subr.mxu0 0.0
        %477 = vmatpush1.msra.mxu0 %v443
        %478 = vmatprep.subr.mxu0 0.0
        %479 = vmatpush1.msra.mxu0 %v444
        %480 = vmatprep.subr.mxu0 0.0
        %481 = vmatpush1.msra.mxu0 %v445
        %482 = vmatprep.subr.mxu0 0.0
        %483 = vmatpush1.msra.mxu0 %v446
        %484 = vmatprep.subr.mxu0 0.0
        %485 = vmatpush1.msra.mxu0 %v447
        %486 = vmatprep.subr.mxu0 0.0
        %487 = vmatpush1.msra.mxu0 %v448
        %488 = vmatprep.subr.mxu0 0.0
        %489 = vmatpush1.msra.mxu0 %v449
        %490 = vmatprep.subr.mxu0 0.0
        %491 = vmatpush1.msra.mxu0 %v450
        %492 = vmatprep.subr.mxu0 0.0
        %493 = vmatpush1.msra.mxu0 %v451
        %494 = vmatprep.subr.mxu0 0.0
        %495 = vmatpush1.msra.mxu0 %v452
        %496 = vmatprep.subr.mxu0 0.0
        %497 = vmatpush1.msra.mxu0 %v453
        %498 = vmatprep.subr.mxu0 0.0
        %499 = vmatpush1.msra.mxu0 %v454
        %500 = vmatprep.subr.mxu0 0.0
        %501 = vmatpush1.msra.mxu0 %v455
        %502 = vmatprep.subr.mxu0 0.0
        %503 = vmatpush1.msra.mxu0 %v456
        %504 = vmatprep.subr.mxu0 0.0
        %505 = vmatpush1.msra.mxu0 %v457
        %506 = vmatprep.subr.mxu0 0.0
        %507 = vmatpush1.msra.mxu0 %v458
        %508 = vmatprep.subr.mxu0 0.0
        %509 = vmatpush1.msra.mxu0 %v459
        %510 = vmatprep.subr.mxu0 0.0
        %511 = vmatpush1.msra.mxu0 %v460
        %512 = vmatprep.subr.mxu0 0.0
        %513 = vmatpush1.msra.mxu0 %v461
        %514 = vmatprep.subr.mxu0 0.0
        %515 = vmatpush1.msra.mxu0 %v462
        %516 = vmatprep.subr.mxu0 0.0
        %517 = vmatpush1.msra.mxu0 %v463
        %518 = vmatprep.subr.mxu0 0.0
        %519 = vmatpush1.msra.mxu0 %v464
        %520 = vmatprep.subr.mxu0 0.0
        %521 = vmatpush1.msra.mxu0 %v465
        %522 = vmatprep.subr.mxu0 0.0
        %523 = vmatpush1.msra.mxu0 %v466
        %524 = vmatprep.subr.mxu0 0.0
        %525 = vmatpush1.msra.mxu0 %v467
        %526 = vmatprep.subr.mxu0 0.0
        %527 = vmatpush1.msra.mxu0 %v468
        %528 = vmatprep.subr.mxu0 0.0
        %529 = vmatpush1.msra.mxu0 %v469
        %530 = vmatprep.subr.mxu0 0.0
        %531 = vmatpush1.msra.mxu0 %v470
        %532 = vmatprep.subr.mxu0 0.0
        %533 = vmatpush1.msra.mxu0 %v471
        %534 = vmatprep.subr.mxu0 0.0
        %535 = vmatpush1.msra.mxu0 %v472
        %536 = vmatprep.subr.mxu0 0.0
        %537 = vmatpush1.msra.mxu0 %v473
        %538 = vmatprep.mubr.f32.mxu0 %v440
        %539 = vmatmul.mubr.f32.gmra.mrb[0].mxu0 %v439
        %v540 = vpop.f32.mrb[0].mxu0
        %v541 = vadd.f32 0.0, %v540
        %v542 = vpop.f32.mrb[0].mxu0
        %543 = vdwg.mxu0
        %v544 = vadd.f32 %v441, %v541
        %545 = vst [vmem:[#allocation2] sm:$0xff] %v544
        // Predicated region
        $region57: #{tpu_custom_call.1} parent=39 // pred_check
          %p546 = pneg %p318
        $region58: #{tpu_custom_call.1} parent=39 // pred_check_branch
          %548 = sbr.rel (%p546) target = $region60
        $region59: #{tpu_custom_call.1} parent=39 // pred_region
          %v549 = vld [vmem:[#allocation2] sm:$0xff]
          %v550 = vld [vmem:[%s4] sm:$0x1]
          %v552 = vlaneseq
          %v553 = vshrl.u32 %v552, 7
          %v554 = vsub.s32 0, %v553
          %v555 = vrot.slane %v550, %v554
          %v557 = vadd.f32 %v549, %v555
          %v558 = vmax.f32 %v557, 0.0
          %559 = vst [vmem:[%s310] sm:$0xff] %v558
        $region60: #{tpu_custom_call.1} parent=39 // pred_fallthru
          _
        %s560 = sand.u32 %s168, 1
        %s561 = scalar_lea.sflag [#allocation5], %s560
        %s562 = sand.u32 %s168, 1
        %s563 = smul.addr %s562, 8
        %s564 = scalar_lea.vmem [#allocation9], %s563
        // Predicated region
        $region61: #{tpu_custom_call.1} parent=39 // pred_check
          %p565 = pneg %p178
        $region62: #{tpu_custom_call.1} parent=39 // pred_check_branch
          %567 = sbr.rel (%p565) target = $region64
        $region63: #{tpu_custom_call.1} parent=39 // pred_region
          %s569 = ssub.s32 128, 128
          %570 = vsyncadd %s561, %s569
          %s571 = smul.addr %s27, 128
          %s572 = scalar_lea.hbm %s5, %s571
          %s574 = sshll.u32 %s564, 4
          %s575 = int_to_ptr.vmem [resolvable:$true] %s574
          %577 = dma.vmem_to_hbm [thread:$0]  %s575, 128, %s572, %s561
        $region64: #{tpu_custom_call.1} parent=39 // pred_fallthru
          _
      $region40: #{tpu_custom_call.1} parent=5 // pred_fallthru
        _
      %p578 = scmp.le.s32.totalorder 2, %s18
      // Predicated region
      $region65: #{tpu_custom_call.1} parent=5 // pred_check
        %p579 = pneg %p578
      $region66: #{tpu_custom_call.1} parent=5 // pred_check_branch
        %581 = sbr.rel (%p579) target = $region68
      $region67: #{tpu_custom_call.1} parent=5 // pred_region
        %s582 = ssub.s32 %s18, 2
        // Predicated region
        $region69: #{tpu_custom_call.1} parent=67 // pred_check
          %p583 = pneg %p184
        $region70: #{tpu_custom_call.1} parent=67 // pred_check_branch
          %585 = sbr.rel (%p583) target = $region72
        $region71: #{tpu_custom_call.1} parent=67 // pred_region
          %s586 = sand.u32 %s169, 1
          %s587 = scalar_lea.sflag [#allocation5], %s586
          %s588 = sand.u32 %s169, 1
          %s589 = smul.addr %s588, 8
          %s590 = scalar_lea.vmem [#allocation9], %s589
          %591 = dma.done %s587, 128
        $region72: #{tpu_custom_call.1} parent=67 // pred_fallthru
          _
      $region68: #{tpu_custom_call.1} parent=5 // pred_fallthru
        _
    $region6: #{tpu_custom_call.1} parent=1 // loop_footer
      %s22 = sadd.s32 1, %s18
    $region7: #{tpu_custom_call.1} parent=1 // loop_footer_branch
      %17 = sbr.rel target = $region3
    $region8: #{tpu_custom_call.1} parent=1 // loop_exit
      _
    %592 = vsyncpa [#allocation4], 1
    %s593 = scalar_lea.sflag [#allocation4], 1
    %594 = vsyncpa %s593, 1
    %595 = vsyncpa [#allocation7], 1
    %596 = vsyncpa [#allocation5], 1
    %s597 = scalar_lea.sflag [#allocation5], 1
    %598 = vsyncpa %s597, 1

</llo_original>
